<compile_context>
chip_gen: v7x
topology: tpu7x:2x2x1
jax: 0.10.0
libtpu: 0.0.40
codegen_flags: <defaults>
</compile_context>

<pallas_src>
import functools
import math

import jax
import jax.numpy as jnp
from jax import lax
from jax.experimental import pallas as pl
from jax.experimental.pallas import tpu as pltpu


def _round_up(x: int, m: int) -> int:
    return ((x + m - 1) // m) * m


def input_embedding_kernel(ids_ref, table_ref, o_ref, *, scale):
    # ids_ref  : (tm, 1)            int32 token ids for this tile
    # table_ref: (vocab_pad, d_pad) full embedding table, VMEM resident
    # o_ref    : (tm, d_pad)        scaled embeddings for this tile
    ids = ids_ref[...]                                    # (tm, 1)
    tm = ids.shape[0]
    vocab_pad = table_ref.shape[0]

    # Lane-dense one-hot selection matrix, then a single MXU matmul.
    iota = lax.broadcasted_iota(jnp.int32, (tm, vocab_pad), 1)
    onehot = (iota == ids).astype(table_ref.dtype)        # (tm, vocab_pad)
    emb = jnp.dot(onehot, table_ref[...],
                  preferred_element_type=jnp.float32,
                  precision=lax.Precision.HIGHEST)        # exact row select
    o_ref[...] = (emb * scale).astype(o_ref.dtype)


def input_embedding_forward(ids, table, *, tm=128):
    """ids: integer array of any leading shape. table: (vocab_size, d_model).
    Returns ids.shape + (d_model,) embeddings scaled by sqrt(d_model)."""
    vocab_size, d_model = table.shape
    scale = math.sqrt(d_model)

    lead_shape = ids.shape
    flat_ids = ids.reshape(-1).astype(jnp.int32)
    m = flat_ids.shape[0]

    # Tile / padding choices: sublane-aligned row tile, lane-aligned (128) vocab
    # and feature axes. No divisibility requirement on the token count.
    tm = _round_up(max(8, min(tm, _round_up(m, 8))), 8)
    m_pad = _round_up(m, tm)
    vocab_pad = _round_up(vocab_size, 128)
    d_pad = _round_up(d_model, 128)

    ids_p = jnp.pad(flat_ids, (0, m_pad - m)).reshape(m_pad, 1)
    table_p = jnp.pad(table, ((0, vocab_pad - vocab_size), (0, d_pad - d_model)))

    kernel = functools.partial(input_embedding_kernel, scale=scale)
    out = pl.pallas_call(
        kernel,
        out_shape=jax.ShapeDtypeStruct((m_pad, d_pad), table.dtype),
        grid_spec=pltpu.PrefetchScalarGridSpec(
            num_scalar_prefetch=0,
            grid=(m_pad // tm,),
            in_specs=[
                pl.BlockSpec((tm, 1), lambda i: (i, 0)),             # ids tile
                pl.BlockSpec((vocab_pad, d_pad), lambda i: (0, 0)),  # full table
            ],
            out_specs=pl.BlockSpec((tm, d_pad), lambda i: (i, 0)),
        ),
        compiler_params=pltpu.CompilerParams(
            dimension_semantics=("parallel",)),
    )(ids_p, table_p)

    out = out[:m, :d_model]
    return out.reshape(*lead_shape, d_model)


def init_embedding_table(key, vocab_size, d_model, dtype=jnp.float32):
    # nn.Embedding default init: N(0, 1)
    return jax.random.normal(key, (vocab_size, d_model), dtype)


if __name__ == "__main__":
    # Small shapes consistent with the module defaults.
    batch, seq = 2, 8
    vocab_size, d_model = 100, 512

    key = jax.random.PRNGKey(0)
    k_ids, k_tab = jax.random.split(key)
    ids = jax.random.randint(k_ids, (batch, seq), 0, vocab_size, dtype=jnp.int32)
    table = init_embedding_table(k_tab, vocab_size, d_model)

    # grid length 2 (even) for the toy token count; real workloads use tm=128+.
    y = input_embedding_forward(ids, table, tm=8)
    y = jax.block_until_ready(y)

    # Reference check in plain JAX (same math as the PyTorch forward).
    y_ref = table[ids] * math.sqrt(d_model)
    assert y.shape == (batch, seq, d_model)
    assert jnp.allclose(y, y_ref, atol=1e-5, rtol=1e-5)

    print("KERNEL_OK")
</pallas_src>

<mosaic_0001>
module attributes {stable_mosaic.version = 11 : i64} {
  func.func @input_embedding_kernel(%arg0: i32, %arg1: memref<8x1xi32, #tpu.memory_space<vmem>>, %arg2: memref<128x512xf32, #tpu.memory_space<vmem>>, %arg3: memref<8x512xf32, #tpu.memory_space<vmem>>) attributes {dimension_semantics = [#tpu.dimension_semantics<parallel>], iteration_bounds = array<i64: 2>, scalar_prefetch = 0 : i64, scratch_operands = 0 : i64, tpu.core_type = #tpu.core_type<tc>, window_params = [{transform_indices = @transform_0, window_bounds = array<i64: 8, 1>}, {pipeline_mode = #tpu.pipeline_mode<synchronous>, transform_indices = @transform_1, window_bounds = array<i64: 128, 512>}, {transform_indices = @transform_2, window_bounds = array<i64: 8, 512>}]} {
    %c0 = arith.constant 0 : index
    %c0_0 = arith.constant 0 : index
    %0 = vector.load %arg1[%c0, %c0_0] : memref<8x1xi32, #tpu.memory_space<vmem>>, vector<8x1xi32>
    %1 = tpu.iota {dimensions = array<i32: 1>} : vector<8x128xi32>
    %2 = vector.broadcast %0 : vector<8x1xi32> to vector<8x128xi32>
    %3 = arith.cmpi eq, %1, %2 : vector<8x128xi32>
    %4 = arith.extui %3 : vector<8x128xi1> to vector<8x128xi32>
    %5 = arith.sitofp %4 : vector<8x128xi32> to vector<8x128xf32>
    %c0_1 = arith.constant 0 : index
    %c0_2 = arith.constant 0 : index
    %6 = vector.load %arg2[%c0_1, %c0_2] : memref<128x512xf32, #tpu.memory_space<vmem>>, vector<128x512xf32>
    %cst = arith.constant dense<0.000000e+00> : vector<8x512xf32>
    %7 = tpu.matmul %5, %6, %cst {dimension_numbers = #tpu.dot_dimension_numbers<[1], [0], [0], [1], [0, 0, 1, 1], [], []>, precision = #tpu.contract_precision<fp32>} : vector<8x128xf32>, vector<128x512xf32>, vector<8x512xf32> -> vector<8x512xf32>
    %cst_3 = arith.constant 22.6274166 : f32
    %8 = vector.broadcast %cst_3 : f32 to vector<8x512xf32>
    %9 = arith.mulf %7, %8 : vector<8x512xf32>
    %c0_4 = arith.constant 0 : index
    %c0_5 = arith.constant 0 : index
    %10 = vector.load %arg3[%c0_4, %c0_5] : memref<8x512xf32, #tpu.memory_space<vmem>>, vector<8x512xf32>
    tpu.vector_store %arg3[%c0_4, %c0_5], %9 {strides = array<i32>} : memref<8x512xf32, #tpu.memory_space<vmem>>, vector<8x512xf32>,
    return
  }
  func.func @transform_0(%arg0: i32) -> (i32, i32) {
    %c0_i32 = arith.constant 0 : i32
    %c0_i32_0 = arith.constant 0 : i32
    return %arg0, %c0_i32 : i32, i32
  }
  func.func @transform_1(%arg0: i32) -> (i32, i32) {
    %c0_i32 = arith.constant 0 : i32
    %c0_i32_0 = arith.constant 0 : i32
    %c0_i32_1 = arith.constant 0 : i32
    return %c0_i32, %c0_i32_0 : i32, i32
  }
  func.func @transform_2(%arg0: i32) -> (i32, i32) {
    %c0_i32 = arith.constant 0 : i32
    %c0_i32_0 = arith.constant 0 : i32
    return %arg0, %c0_i32 : i32, i32
  }
}

</mosaic_0001>

<llo_original>
// kernel: tpu_custom_call.1
$region0: #{tpu_custom_call.1}
  #allocation0 [shape = 'u32[]', space=smem, size = 0x4, offset = 0x4, fixed_abs, tag = 'smem constant byte address 0x4 - core index']
  #allocation1 [shape = 'u32[144,128]{1,0:T(1,128)}', space=vmem, size = 0x12000, scoped, tag = 'internal scratch']
  %s0 = inlined_call_operand.vmem [shape: s32[16,1], index: 0, kind: input, shape index: {}]
  %s1 = inlined_call_operand.hbm [shape: f32[128,512], index: 1, kind: input, shape index: {}]
  %s2 = inlined_call_operand.hbm [shape: f32[16,512], index: 2, kind: output, shape index: {}]
  %s3 = sld [smem:[#allocation0]]
  $region45: #{tpu_custom_call.1} parent=0
    _
  %s5 = ssub.s32 1, %s3
  %s6 = scalar_select 0, %s5, %s3
  $region1: #{tpu_custom_call.1} parent=0
    #allocation2 [shape = 'u8[262144]{0}', space=vmem, size = 0x40000, scoped, tag = 'input window, operand 1, single buffered']
    #allocation3 [shape = 's32[2]{0}', space=sflag, size = 0x8, scoped, tag = 'scoped memory for tpu_custom_call.1']
    #allocation4 [shape = 's32[2]{0}', space=sflag, size = 0x8, scoped, tag = 'scoped memory for tpu_custom_call.1']
    #allocation5 [shape = 'u8[32768]{0}', space=vmem, size = 0x8000, scoped, tag = 'output window, operand 0']
    %7 = vsyncpa [#allocation3], 0
    %8 = vsyncpa [#allocation4], 0
    %s9 = scalar_lea.sflag [#allocation4], 1
    %10 = vsyncpa %s9, 0
    loop: start=0, step=1, limit=4
    $region2: #{tpu_custom_call.1} parent=1 // loop_pre_header
      _
    $region3: #{tpu_custom_call.1} parent=1 // loop_header
      %s12 = sphi 0, %s16
      %p13 = scmp.ge.s32.totalorder %s12, 4
      %s22 = sphi 0, %s24
      %s25 = sphi 0, %s22
      %s26 = sphi 0, %s25
      %s42 = sphi 0, %s26
      %s46 = sphi 0, %s46
      %s48 = sphi 0, %s46
      %s49 = sphi 0, %s48
      %s63 = sphi 0, %s49
      %s69 = sphi 0, %s71
      %s72 = sphi 0, %s69
      %s73 = sphi 0, %s72
      %s89 = sphi 0, %s73
    $region4: #{tpu_custom_call.1} parent=1 // loop_header_branch
      %15 = sbr.rel (%p13) target = $region8
    $region5: #{tpu_custom_call.1} parent=1 // loop_body
      %s17 = ssub.s32 %s12, 1
      %s18 = ssub.s32 %s12, 2
      %s19 = sadd.s32 %s12, 1
      %s20 = ssub.s32 %s12, %s19
      %p21 = scmp.eq.s32.totalorder %s20, 0
      %s23 = sadd.s32 %s22, 1
      %s24 = scalar_select %p21, %s22, %s23
      %p27 = pneg %p21
      %p28 = scmp.eq.s32.totalorder %s12, 1
      %p29 = por %p27, %p28
      %p30 = scmp.ne.s32.totalorder %s22, %s25
      %p31 = scmp.eq.s32.totalorder %s12, 0
      %p32 = por %p30, %p31
      %p33 = scmp.ne.s32.totalorder %s22, %s25
      %p34 = scmp.eq.s32.totalorder %s17, 1
      %p35 = por %p33, %p34
      %p36 = scmp.ne.s32.totalorder %s25, %s26
      %p37 = scmp.eq.s32.totalorder %s17, 0
      %p38 = por %p36, %p37
      %p39 = scmp.ne.s32.totalorder %s25, %s26
      %p40 = scmp.eq.s32.totalorder %s18, 1
      %p41 = por %p39, %p40
      %p43 = scmp.ne.s32.totalorder %s26, %s42
      %p44 = scmp.eq.s32.totalorder %s18, 0
      %p45 = por %p43, %p44
      %s47 = sadd.s32 %s46, 1
      %p50 = scmp.eq.s32.totalorder %s12, 1
      %p51 = scmp.ne.s32.totalorder %s46, %s48
      %p52 = scmp.eq.s32.totalorder %s12, 0
      %p53 = por %p51, %p52
      %p54 = scmp.ne.s32.totalorder %s46, %s48
      %p55 = scmp.eq.s32.totalorder %s17, 1
      %p56 = por %p54, %p55
      %p57 = scmp.ne.s32.totalorder %s48, %s49
      %p58 = scmp.eq.s32.totalorder %s17, 0
      %p59 = por %p57, %p58
      %p60 = scmp.ne.s32.totalorder %s48, %s49
      %p61 = scmp.eq.s32.totalorder %s18, 1
      %p62 = por %p60, %p61
      %p64 = scmp.ne.s32.totalorder %s49, %s63
      %p65 = scmp.eq.s32.totalorder %s18, 0
      %p66 = por %p64, %p65
      %s67 = ssub.s32 %s12, %s19
      %p68 = scmp.eq.s32.totalorder %s67, 0
      %s70 = sadd.s32 %s69, 1
      %s71 = scalar_select %p68, %s69, %s70
      %p74 = pneg %p68
      %p75 = scmp.eq.s32.totalorder %s12, 1
      %p76 = por %p74, %p75
      %p77 = scmp.ne.s32.totalorder %s69, %s72
      %p78 = scmp.eq.s32.totalorder %s12, 0
      %p79 = por %p77, %p78
      %p80 = scmp.ne.s32.totalorder %s69, %s72
      %p81 = scmp.eq.s32.totalorder %s17, 1
      %p82 = por %p80, %p81
      %p83 = scmp.ne.s32.totalorder %s72, %s73
      %p84 = scmp.eq.s32.totalorder %s17, 0
      %p85 = por %p83, %p84
      %p86 = scmp.ne.s32.totalorder %s72, %s73
      %p87 = scmp.eq.s32.totalorder %s18, 1
      %p88 = por %p86, %p87
      %p90 = scmp.ne.s32.totalorder %s73, %s89
      %p91 = scmp.eq.s32.totalorder %s18, 0
      %p92 = por %p90, %p91
      %p93 = scmp.le.s32.totalorder 1, %s12
      %p94 = scmp.lt.s32.totalorder %s12, 3
      %p95 = pnand %p93, %p94
      %p96 = pneg %p95
      // Predicated region
      $region9: #{tpu_custom_call.1} parent=5 // pred_check
        _
      $region10: #{tpu_custom_call.1} parent=5 // pred_check_branch
        %98 = sbr.rel (%p95) target = $region12
      $region11: #{tpu_custom_call.1} parent=5 // pred_region
        %s99 = ssub.s32 %s12, 1
        // Predicated region
        $region13: #{tpu_custom_call.1} parent=11 // pred_check
          %p100 = pneg %p59
        $region14: #{tpu_custom_call.1} parent=11 // pred_check_branch
          %102 = sbr.rel (%p100) target = $region16
        $region15: #{tpu_custom_call.1} parent=11 // pred_region
          %s104 = ssub.s32 8192, 8192
          %105 = vsyncadd [#allocation3], %s104
          %s106 = sshll.u32 [#allocation2], 4
          %s107 = int_to_ptr.vmem [resolvable:$true] %s106
          %112 = dma.hbm_to_vmem [thread:$0]  %s1, 8192, %s107, [#allocation3], 512, 512, 32
        $region16: #{tpu_custom_call.1} parent=11 // pred_fallthru
          _
      $region12: #{tpu_custom_call.1} parent=5 // pred_fallthru
        _
      %p113 = scmp.lt.s32.totalorder %s12, 2
      // Predicated region
      $region17: #{tpu_custom_call.1} parent=5 // pred_check
        %p114 = pneg %p113
      $region18: #{tpu_custom_call.1} parent=5 // pred_check_branch
        %116 = sbr.rel (%p114) target = $region20
      $region19: #{tpu_custom_call.1} parent=5 // pred_region
        // Predicated region
        $region21: #{tpu_custom_call.1} parent=19 // pred_check
          %p117 = pneg %p32
        $region22: #{tpu_custom_call.1} parent=19 // pred_check_branch
          %119 = sbr.rel (%p117) target = $region24
        $region23: #{tpu_custom_call.1} parent=19 // pred_region
          %p120 = scmp.lt.s32.totalorder %s12, 1
          %s121 = scalar_select %p120, %s12, 1
          %s122 = smul.addr %s121, 8
          %s123 = scalar_lea.vmem %s0, %s122
        $region24: #{tpu_custom_call.1} parent=19 // pred_fallthru
          _
      $region20: #{tpu_custom_call.1} parent=5 // pred_fallthru
        _
      %p124 = scmp.le.s32.totalorder 1, %s12
      %p125 = scmp.lt.s32.totalorder %s12, 3
      %p126 = pnand %p124, %p125
      %p127 = pneg %p126
      // Predicated region
      $region25: #{tpu_custom_call.1} parent=5 // pred_check
        _
      $region26: #{tpu_custom_call.1} parent=5 // pred_check_branch
        %129 = sbr.rel (%p126) target = $region28
      $region27: #{tpu_custom_call.1} parent=5 // pred_region
        %s130 = ssub.s32 %s12, 1
        // Predicated region
        $region29: #{tpu_custom_call.1} parent=27 // pred_check
          %p131 = pneg %p59
        $region30: #{tpu_custom_call.1} parent=27 // pred_check_branch
          %133 = sbr.rel (%p131) target = $region32
        $region31: #{tpu_custom_call.1} parent=27 // pred_region
          %134 = dma.done [#allocation3], 8192
        $region32: #{tpu_custom_call.1} parent=27 // pred_fallthru
          _
        %p135 = scmp.lt.s32.totalorder %s17, 1
        %s136 = scalar_select %p135, %s17, 1
        %s137 = smul.addr %s136, 8
        %s138 = scalar_lea.vmem %s0, %s137
        %p139 = pneg %p38
        %p140 = pneg %p35
        %p141 = pneg %p59
        %p142 = pneg %p56
        %p143 = pneg %p85
        %p144 = pneg %p82
        %s145 = sand.u32 %s72, 1
        %s146 = scalar_lea.sflag [#allocation4], %s145
        %s147 = sand.u32 %s72, 1
        %s148 = smul.addr %s147, 32
        %s149 = scalar_lea.vmem [#allocation5], %s148
        %p150 = scmp.lt.s32.totalorder %s17, 1
        %s151 = scalar_select %p150, %s17, 1
        %s152 = smul.addr %s151, 8
        %s153 = scalar_lea.vmem %s0, %s152
        %v154 = vld [vmem:[%s153] sm:$0xff]
        %v155 = vlaneseq
        %v156 = vand.u32 %v155, 127
        %157 = vset.pattern.permute.xlu0 0
        %158 = vperm.xlu0 %157, %v154
        %v159 = vpop.permute.xlu0 %158
        %vm160 = vcmp.eq.s32.totalorder %v156, %v159
        %v161 = vsel %vm160, 1, 0
        %v162 = vcvt.s32.f32 %v161
        %v163 = vld [vmem:[#allocation2] sm:$0xff]
        %v164 = vld [vmem:[#allocation2 + $0x8] sm:$0xff]
        %v165 = vld [vmem:[#allocation2 + $0x10] sm:$0xff]
        %v166 = vld [vmem:[#allocation2 + $0x18] sm:$0xff]
        %v167 = vld [vmem:[#allocation2 + $0x20] sm:$0xff]
        %v168 = vld [vmem:[#allocation2 + $0x28] sm:$0xff]
        %v169 = vld [vmem:[#allocation2 + $0x30] sm:$0xff]
        %v170 = vld [vmem:[#allocation2 + $0x38] sm:$0xff]
        %v171 = vld [vmem:[#allocation2 + $0x40] sm:$0xff]
        %v172 = vld [vmem:[#allocation2 + $0x48] sm:$0xff]
        %v173 = vld [vmem:[#allocation2 + $0x50] sm:$0xff]
        %v174 = vld [vmem:[#allocation2 + $0x58] sm:$0xff]
        %v175 = vld [vmem:[#allocation2 + $0x60] sm:$0xff]
        %v176 = vld [vmem:[#allocation2 + $0x68] sm:$0xff]
        %v177 = vld [vmem:[#allocation2 + $0x70] sm:$0xff]
        %v178 = vld [vmem:[#allocation2 + $0x78] sm:$0xff]
        %v179 = vld [vmem:[#allocation2 + $0x80] sm:$0xff]
        %v180 = vld [vmem:[#allocation2 + $0x88] sm:$0xff]
        %v181 = vld [vmem:[#allocation2 + $0x90] sm:$0xff]
        %v182 = vld [vmem:[#allocation2 + $0x98] sm:$0xff]
        %v183 = vld [vmem:[#allocation2 + $0xa0] sm:$0xff]
        %v184 = vld [vmem:[#allocation2 + $0xa8] sm:$0xff]
        %v185 = vld [vmem:[#allocation2 + $0xb0] sm:$0xff]
        %v186 = vld [vmem:[#allocation2 + $0xb8] sm:$0xff]
        %v187 = vld [vmem:[#allocation2 + $0xc0] sm:$0xff]
        %v188 = vld [vmem:[#allocation2 + $0xc8] sm:$0xff]
        %v189 = vld [vmem:[#allocation2 + $0xd0] sm:$0xff]
        %v190 = vld [vmem:[#allocation2 + $0xd8] sm:$0xff]
        %v191 = vld [vmem:[#allocation2 + $0xe0] sm:$0xff]
        %v192 = vld [vmem:[#allocation2 + $0xe8] sm:$0xff]
        %v193 = vld [vmem:[#allocation2 + $0xf0] sm:$0xff]
        %v194 = vld [vmem:[#allocation2 + $0xf8] sm:$0xff]
        %v195 = vld [vmem:[#allocation2 + $0x100] sm:$0xff]
        %v196 = vld [vmem:[#allocation2 + $0x108] sm:$0xff]
        %v197 = vld [vmem:[#allocation2 + $0x110] sm:$0xff]
        %v198 = vld [vmem:[#allocation2 + $0x118] sm:$0xff]
        %v199 = vld [vmem:[#allocation2 + $0x120] sm:$0xff]
        %v200 = vld [vmem:[#allocation2 + $0x128] sm:$0xff]
        %v201 = vld [vmem:[#allocation2 + $0x130] sm:$0xff]
        %v202 = vld [vmem:[#allocation2 + $0x138] sm:$0xff]
        %v203 = vld [vmem:[#allocation2 + $0x140] sm:$0xff]
        %v204 = vld [vmem:[#allocation2 + $0x148] sm:$0xff]
        %v205 = vld [vmem:[#allocation2 + $0x150] sm:$0xff]
        %v206 = vld [vmem:[#allocation2 + $0x158] sm:$0xff]
        %v207 = vld [vmem:[#allocation2 + $0x160] sm:$0xff]
        %v208 = vld [vmem:[#allocation2 + $0x168] sm:$0xff]
        %v209 = vld [vmem:[#allocation2 + $0x170] sm:$0xff]
        %v210 = vld [vmem:[#allocation2 + $0x178] sm:$0xff]
        %v211 = vld [vmem:[#allocation2 + $0x180] sm:$0xff]
        %v212 = vld [vmem:[#allocation2 + $0x188] sm:$0xff]
        %v213 = vld [vmem:[#allocation2 + $0x190] sm:$0xff]
        %v214 = vld [vmem:[#allocation2 + $0x198] sm:$0xff]
        %v215 = vld [vmem:[#allocation2 + $0x1a0] sm:$0xff]
        %v216 = vld [vmem:[#allocation2 + $0x1a8] sm:$0xff]
        %v217 = vld [vmem:[#allocation2 + $0x1b0] sm:$0xff]
        %v218 = vld [vmem:[#allocation2 + $0x1b8] sm:$0xff]
        %v219 = vld [vmem:[#allocation2 + $0x1c0] sm:$0xff]
        %v220 = vld [vmem:[#allocation2 + $0x1c8] sm:$0xff]
        %v221 = vld [vmem:[#allocation2 + $0x1d0] sm:$0xff]
        %v222 = vld [vmem:[#allocation2 + $0x1d8] sm:$0xff]
        %v223 = vld [vmem:[#allocation2 + $0x1e0] sm:$0xff]
        %v224 = vld [vmem:[#allocation2 + $0x1e8] sm:$0xff]
        %v225 = vld [vmem:[#allocation2 + $0x1f0] sm:$0xff]
        %v226 = vld [vmem:[#allocation2 + $0x1f8] sm:$0xff]
        %v227 = vand.u32 %v164, 4294901760
        %228 = vmatprep.subr.mxu0 %v227
        %v229 = vand.u32 %v163, 4294901760
        %230 = vmatpush1.msra.mxu0 %v229
        %v231 = vand.u32 %v168, 4294901760
        %232 = vmatprep.subr.mxu0 %v231
        %v233 = vand.u32 %v167, 4294901760
        %234 = vmatpush1.msra.mxu0 %v233
        %v235 = vand.u32 %v172, 4294901760
        %236 = vmatprep.subr.mxu0 %v235
        %v237 = vand.u32 %v171, 4294901760
        %238 = vmatpush1.msra.mxu0 %v237
        %v239 = vand.u32 %v176, 4294901760
        %240 = vmatprep.subr.mxu0 %v239
        %v241 = vand.u32 %v175, 4294901760
        %242 = vmatpush1.msra.mxu0 %v241
        %v243 = vand.u32 %v180, 4294901760
        %244 = vmatprep.subr.mxu0 %v243
        %v245 = vand.u32 %v179, 4294901760
        %246 = vmatpush1.msra.mxu0 %v245
        %v247 = vand.u32 %v184, 4294901760
        %248 = vmatprep.subr.mxu0 %v247
        %v249 = vand.u32 %v183, 4294901760
        %250 = vmatpush1.msra.mxu0 %v249
        %v251 = vand.u32 %v188, 4294901760
        %252 = vmatprep.subr.mxu0 %v251
        %v253 = vand.u32 %v187, 4294901760
        %254 = vmatpush1.msra.mxu0 %v253
        %v255 = vand.u32 %v192, 4294901760
        %256 = vmatprep.subr.mxu0 %v255
        %v257 = vand.u32 %v191, 4294901760
        %258 = vmatpush1.msra.mxu0 %v257
        %v259 = vand.u32 %v196, 4294901760
        %260 = vmatprep.subr.mxu0 %v259
        %v261 = vand.u32 %v195, 4294901760
        %262 = vmatpush1.msra.mxu0 %v261
        %v263 = vand.u32 %v200, 4294901760
        %264 = vmatprep.subr.mxu0 %v263
        %v265 = vand.u32 %v199, 4294901760
        %266 = vmatpush1.msra.mxu0 %v265
        %v267 = vand.u32 %v204, 4294901760
        %268 = vmatprep.subr.mxu0 %v267
        %v269 = vand.u32 %v203, 4294901760
        %270 = vmatpush1.msra.mxu0 %v269
        %v271 = vand.u32 %v208, 4294901760
        %272 = vmatprep.subr.mxu0 %v271
        %v273 = vand.u32 %v207, 4294901760
        %274 = vmatpush1.msra.mxu0 %v273
        %v275 = vand.u32 %v212, 4294901760
        %276 = vmatprep.subr.mxu0 %v275
        %v277 = vand.u32 %v211, 4294901760
        %278 = vmatpush1.msra.mxu0 %v277
        %v279 = vand.u32 %v216, 4294901760
        %280 = vmatprep.subr.mxu0 %v279
        %v281 = vand.u32 %v215, 4294901760
        %282 = vmatpush1.msra.mxu0 %v281
        %v283 = vand.u32 %v220, 4294901760
        %284 = vmatprep.subr.mxu0 %v283
        %v285 = vand.u32 %v219, 4294901760
        %286 = vmatpush1.msra.mxu0 %v285
        %v287 = vand.u32 %v224, 4294901760
        %288 = vmatprep.subr.mxu0 %v287
        %v289 = vand.u32 %v223, 4294901760
        %290 = vmatpush1.msra.mxu0 %v289
        %291 = vmatprep.subr.mxu0 0.0
        %292 = vmatpush1.msra.mxu0 0.0
        %293 = vmatprep.subr.mxu0 0.0
        %294 = vmatpush1.msra.mxu0 0.0
        %295 = vmatprep.subr.mxu0 0.0
        %296 = vmatpush1.msra.mxu0 0.0
        %297 = vmatprep.subr.mxu0 0.0
        %298 = vmatpush1.msra.mxu0 0.0
        %299 = vmatprep.subr.mxu0 0.0
        %300 = vmatpush1.msra.mxu0 0.0
        %301 = vmatprep.subr.mxu0 0.0
        %302 = vmatpush1.msra.mxu0 0.0
        %303 = vmatprep.subr.mxu0 0.0
        %304 = vmatpush1.msra.mxu0 0.0
        %305 = vmatprep.subr.mxu0 0.0
        %306 = vmatpush1.msra.mxu0 0.0
        %307 = vmatprep.subr.mxu0 0.0
        %308 = vmatpush1.msra.mxu0 0.0
        %309 = vmatprep.subr.mxu0 0.0
        %310 = vmatpush1.msra.mxu0 0.0
        %311 = vmatprep.subr.mxu0 0.0
        %312 = vmatpush1.msra.mxu0 0.0
        %313 = vmatprep.subr.mxu0 0.0
        %314 = vmatpush1.msra.mxu0 0.0
        %315 = vmatprep.subr.mxu0 0.0
        %316 = vmatpush1.msra.mxu0 0.0
        %317 = vmatprep.subr.mxu0 0.0
        %318 = vmatpush1.msra.mxu0 0.0
        %319 = vmatprep.subr.mxu0 0.0
        %320 = vmatpush1.msra.mxu0 0.0
        %321 = vmatprep.subr.mxu0 0.0
        %322 = vmatpush1.msra.mxu0 0.0
        %323 = vmatprep.mubr.f32.mxu0 0.0
        %v324 = vand.u32 %v162, 4294901760
        %v325 = vsub.f32 %v162, %v324
        %v326 = vand.u32 %v325, 4294901760
        %v327 = vsub.f32 %v325, %v326
        %v328 = vand.u32 %v327, 4294901760
        %329 = vmatmul.mubr.f32.gmra.mrb[0].mxu0 %v328
        %v330 = vpop.f32.mrb[0].mxu0
        %v331 = vadd.f32 0.0, %v330
        %v332 = vpop.f32.mrb[0].mxu0
        %v333 = vadd.f32 0.0, %v332
        %334 = vdwg.mxu0
        %v335 = vand.u32 %v164, 4294901760
        %v336 = vsub.f32 %v164, %v335
        %v337 = vand.u32 %v336, 4294901760
        %v338 = vsub.f32 %v336, %v337
        %v339 = vand.u32 %v338, 4294901760
        %340 = vmatprep.subr.mxu0 %v339
        %v341 = vand.u32 %v163, 4294901760
        %v342 = vsub.f32 %v163, %v341
        %v343 = vand.u32 %v342, 4294901760
        %v344 = vsub.f32 %v342, %v343
        %v345 = vand.u32 %v344, 4294901760
        %346 = vmatpush1.msra.mxu0 %v345
        %v347 = vand.u32 %v168, 4294901760
        %v348 = vsub.f32 %v168, %v347
        %v349 = vand.u32 %v348, 4294901760
        %v350 = vsub.f32 %v348, %v349
        %v351 = vand.u32 %v350, 4294901760
        %352 = vmatprep.subr.mxu0 %v351
        %v353 = vand.u32 %v167, 4294901760
        %v354 = vsub.f32 %v167, %v353
        %v355 = vand.u32 %v354, 4294901760
        %v356 = vsub.f32 %v354, %v355
        %v357 = vand.u32 %v356, 4294901760
        %358 = vmatpush1.msra.mxu0 %v357
        %v359 = vand.u32 %v172, 4294901760
        %v360 = vsub.f32 %v172, %v359
        %v361 = vand.u32 %v360, 4294901760
        %v362 = vsub.f32 %v360, %v361
        %v363 = vand.u32 %v362, 4294901760
        %364 = vmatprep.subr.mxu0 %v363
        %v365 = vand.u32 %v171, 4294901760
        %v366 = vsub.f32 %v171, %v365
        %v367 = vand.u32 %v366, 4294901760
        %v368 = vsub.f32 %v366, %v367
        %v369 = vand.u32 %v368, 4294901760
        %370 = vmatpush1.msra.mxu0 %v369
        %v371 = vand.u32 %v176, 4294901760
        %v372 = vsub.f32 %v176, %v371
        %v373 = vand.u32 %v372, 4294901760
        %v374 = vsub.f32 %v372, %v373
        %v375 = vand.u32 %v374, 4294901760
        %376 = vmatprep.subr.mxu0 %v375
        %v377 = vand.u32 %v175, 4294901760
        %v378 = vsub.f32 %v175, %v377
        %v379 = vand.u32 %v378, 4294901760
        %v380 = vsub.f32 %v378, %v379
        %v381 = vand.u32 %v380, 4294901760
        %382 = vmatpush1.msra.mxu0 %v381
        %v383 = vand.u32 %v180, 4294901760
        %v384 = vsub.f32 %v180, %v383
        %v385 = vand.u32 %v384, 4294901760
        %v386 = vsub.f32 %v384, %v385
        %v387 = vand.u32 %v386, 4294901760
        %388 = vmatprep.subr.mxu0 %v387
        %v389 = vand.u32 %v179, 4294901760
        %v390 = vsub.f32 %v179, %v389
        %v391 = vand.u32 %v390, 4294901760
        %v392 = vsub.f32 %v390, %v391
        %v393 = vand.u32 %v392, 4294901760
        %394 = vmatpush1.msra.mxu0 %v393
        %v395 = vand.u32 %v184, 4294901760
        %v396 = vsub.f32 %v184, %v395
        %v397 = vand.u32 %v396, 4294901760
        %v398 = vsub.f32 %v396, %v397
        %v399 = vand.u32 %v398, 4294901760
        %400 = vmatprep.subr.mxu0 %v399
        %v401 = vand.u32 %v183, 4294901760
        %v402 = vsub.f32 %v183, %v401
        %v403 = vand.u32 %v402, 4294901760
        %v404 = vsub.f32 %v402, %v403
        %v405 = vand.u32 %v404, 4294901760
        %406 = vmatpush1.msra.mxu0 %v405
        %v407 = vand.u32 %v188, 4294901760
        %v408 = vsub.f32 %v188, %v407
        %v409 = vand.u32 %v408, 4294901760
        %v410 = vsub.f32 %v408, %v409
        %v411 = vand.u32 %v410, 4294901760
        %412 = vmatprep.subr.mxu0 %v411
        %v413 = vand.u32 %v187, 4294901760
        %v414 = vsub.f32 %v187, %v413
        %v415 = vand.u32 %v414, 4294901760
        %v416 = vsub.f32 %v414, %v415
        %v417 = vand.u32 %v416, 4294901760
        %418 = vmatpush1.msra.mxu0 %v417
        %v419 = vand.u32 %v192, 4294901760
        %v420 = vsub.f32 %v192, %v419
        %v421 = vand.u32 %v420, 4294901760
        %v422 = vsub.f32 %v420, %v421
        %v423 = vand.u32 %v422, 4294901760
        %424 = vmatprep.subr.mxu0 %v423
        %v425 = vand.u32 %v191, 4294901760
        %v426 = vsub.f32 %v191, %v425
        %v427 = vand.u32 %v426, 4294901760
        %v428 = vsub.f32 %v426, %v427
        %v429 = vand.u32 %v428, 4294901760
        %430 = vmatpush1.msra.mxu0 %v429
        %v431 = vand.u32 %v196, 4294901760
        %v432 = vsub.f32 %v196, %v431
        %v433 = vand.u32 %v432, 4294901760
        %v434 = vsub.f32 %v432, %v433
        %v435 = vand.u32 %v434, 4294901760
        %436 = vmatprep.subr.mxu0 %v435
        %v437 = vand.u32 %v195, 4294901760
        %v438 = vsub.f32 %v195, %v437
        %v439 = vand.u32 %v438, 4294901760
        %v440 = vsub.f32 %v438, %v439
        %v441 = vand.u32 %v440, 4294901760
        %442 = vmatpush1.msra.mxu0 %v441
        %v443 = vand.u32 %v200, 4294901760
        %v444 = vsub.f32 %v200, %v443
        %v445 = vand.u32 %v444, 4294901760
        %v446 = vsub.f32 %v444, %v445
        %v447 = vand.u32 %v446, 4294901760
        %448 = vmatprep.subr.mxu0 %v447
        %v449 = vand.u32 %v199, 4294901760
        %v450 = vsub.f32 %v199, %v449
        %v451 = vand.u32 %v450, 4294901760
        %v452 = vsub.f32 %v450, %v451
        %v453 = vand.u32 %v452, 4294901760
        %454 = vmatpush1.msra.mxu0 %v453
        %v455 = vand.u32 %v204, 4294901760
        %v456 = vsub.f32 %v204, %v455
        %v457 = vand.u32 %v456, 4294901760
        %v458 = vsub.f32 %v456, %v457
        %v459 = vand.u32 %v458, 4294901760
        %460 = vmatprep.subr.mxu0 %v459
        %v461 = vand.u32 %v203, 4294901760
        %v462 = vsub.f32 %v203, %v461
        %v463 = vand.u32 %v462, 4294901760
        %v464 = vsub.f32 %v462, %v463
        %v465 = vand.u32 %v464, 4294901760
        %466 = vmatpush1.msra.mxu0 %v465
        %v467 = vand.u32 %v208, 4294901760
        %v468 = vsub.f32 %v208, %v467
        %v469 = vand.u32 %v468, 4294901760
        %v470 = vsub.f32 %v468, %v469
        %v471 = vand.u32 %v470, 4294901760
        %472 = vmatprep.subr.mxu0 %v471
        %v473 = vand.u32 %v207, 4294901760
        %v474 = vsub.f32 %v207, %v473
        %v475 = vand.u32 %v474, 4294901760
        %v476 = vsub.f32 %v474, %v475
        %v477 = vand.u32 %v476, 4294901760
        %478 = vmatpush1.msra.mxu0 %v477
        %v479 = vand.u32 %v212, 4294901760
        %v480 = vsub.f32 %v212, %v479
        %v481 = vand.u32 %v480, 4294901760
        %v482 = vsub.f32 %v480, %v481
        %v483 = vand.u32 %v482, 4294901760
        %484 = vmatprep.subr.mxu0 %v483
        %v485 = vand.u32 %v211, 4294901760
        %v486 = vsub.f32 %v211, %v485
        %v487 = vand.u32 %v486, 4294901760
        %v488 = vsub.f32 %v486, %v487
        %v489 = vand.u32 %v488, 4294901760
        %490 = vmatpush1.msra.mxu0 %v489
        %v491 = vand.u32 %v216, 4294901760
        %v492 = vsub.f32 %v216, %v491
        %v493 = vand.u32 %v492, 4294901760
        %v494 = vsub.f32 %v492, %v493
        %v495 = vand.u32 %v494, 4294901760
        %496 = vmatprep.subr.mxu0 %v495
        %v497 = vand.u32 %v215, 4294901760
        %v498 = vsub.f32 %v215, %v497
        %v499 = vand.u32 %v498, 4294901760
        %v500 = vsub.f32 %v498, %v499
        %v501 = vand.u32 %v500, 4294901760
        %502 = vmatpush1.msra.mxu0 %v501
        %v503 = vand.u32 %v220, 4294901760
        %v504 = vsub.f32 %v220, %v503
        %v505 = vand.u32 %v504, 4294901760
        %v506 = vsub.f32 %v504, %v505
        %v507 = vand.u32 %v506, 4294901760
        %508 = vmatprep.subr.mxu0 %v507
        %v509 = vand.u32 %v219, 4294901760
        %v510 = vsub.f32 %v219, %v509
        %v511 = vand.u32 %v510, 4294901760
        %v512 = vsub.f32 %v510, %v511
        %v513 = vand.u32 %v512, 4294901760
        %514 = vmatpush1.msra.mxu0 %v513
        %v515 = vand.u32 %v224, 4294901760
        %v516 = vsub.f32 %v224, %v515
        %v517 = vand.u32 %v516, 4294901760
        %v518 = vsub.f32 %v516, %v517
        %v519 = vand.u32 %v518, 4294901760
        %520 = vmatprep.subr.mxu0 %v519
        %v521 = vand.u32 %v223, 4294901760
        %v522 = vsub.f32 %v223, %v521
        %v523 = vand.u32 %v522, 4294901760
        %v524 = vsub.f32 %v522, %v523
        %v525 = vand.u32 %v524, 4294901760
        %526 = vmatpush1.msra.mxu0 %v525
        %527 = vmatprep.subr.mxu0 0.0
        %528 = vmatpush1.msra.mxu0 0.0
        %529 = vmatprep.subr.mxu0 0.0
        %530 = vmatpush1.msra.mxu0 0.0
        %531 = vmatprep.subr.mxu0 0.0
        %532 = vmatpush1.msra.mxu0 0.0
        %533 = vmatprep.subr.mxu0 0.0
        %534 = vmatpush1.msra.mxu0 0.0
        %535 = vmatprep.subr.mxu0 0.0
        %536 = vmatpush1.msra.mxu0 0.0
        %537 = vmatprep.subr.mxu0 0.0
        %538 = vmatpush1.msra.mxu0 0.0
        %539 = vmatprep.subr.mxu0 0.0
        %540 = vmatpush1.msra.mxu0 0.0
        %541 = vmatprep.subr.mxu0 0.0
        %542 = vmatpush1.msra.mxu0 0.0
        %543 = vmatprep.subr.mxu0 0.0
        %544 = vmatpush1.msra.mxu0 0.0
        %545 = vmatprep.subr.mxu0 0.0
        %546 = vmatpush1.msra.mxu0 0.0
        %547 = vmatprep.subr.mxu0 0.0
        %548 = vmatpush1.msra.mxu0 0.0
        %549 = vmatprep.subr.mxu0 0.0
        %550 = vmatpush1.msra.mxu0 0.0
        %551 = vmatprep.subr.mxu0 0.0
        %552 = vmatpush1.msra.mxu0 0.0
        %553 = vmatprep.subr.mxu0 0.0
        %554 = vmatpush1.msra.mxu0 0.0
        %555 = vmatprep.subr.mxu0 0.0
        %556 = vmatpush1.msra.mxu0 0.0
        %557 = vmatprep.subr.mxu0 0.0
        %558 = vmatpush1.msra.mxu0 0.0
        %559 = vmatprep.mubr.f32.mxu0 0.0
        %v560 = vand.u32 %v162, 4294901760
        %561 = vmatmul.mubr.f32.gmra.mrb[0].mxu0 %v560
        %v562 = vpop.f32.mrb[0].mxu0
        %v563 = vadd.f32 %v331, %v562
        %v564 = vpop.f32.mrb[0].mxu0
        %v565 = vadd.f32 %v333, %v564
        %566 = vdwg.mxu0
        %v567 = vand.u32 %v164, 4294901760
        %v568 = vsub.f32 %v164, %v567
        %569 = vmatprep.subr.mxu0 %v568
        %v570 = vand.u32 %v163, 4294901760
        %v571 = vsub.f32 %v163, %v570
        %572 = vmatpush1.msra.mxu0 %v571
        %v573 = vand.u32 %v168, 4294901760
        %v574 = vsub.f32 %v168, %v573
        %575 = vmatprep.subr.mxu0 %v574
        %v576 = vand.u32 %v167, 4294901760
        %v577 = vsub.f32 %v167, %v576
        %578 = vmatpush1.msra.mxu0 %v577
        %v579 = vand.u32 %v172, 4294901760
        %v580 = vsub.f32 %v172, %v579
        %581 = vmatprep.subr.mxu0 %v580
        %v582 = vand.u32 %v171, 4294901760
        %v583 = vsub.f32 %v171, %v582
        %584 = vmatpush1.msra.mxu0 %v583
        %v585 = vand.u32 %v176, 4294901760
        %v586 = vsub.f32 %v176, %v585
        %587 = vmatprep.subr.mxu0 %v586
        %v588 = vand.u32 %v175, 4294901760
        %v589 = vsub.f32 %v175, %v588
        %590 = vmatpush1.msra.mxu0 %v589
        %v591 = vand.u32 %v180, 4294901760
        %v592 = vsub.f32 %v180, %v591
        %593 = vmatprep.subr.mxu0 %v592
        %v594 = vand.u32 %v179, 4294901760
        %v595 = vsub.f32 %v179, %v594
        %596 = vmatpush1.msra.mxu0 %v595
        %v597 = vand.u32 %v184, 4294901760
        %v598 = vsub.f32 %v184, %v597
        %599 = vmatprep.subr.mxu0 %v598
        %v600 = vand.u32 %v183, 4294901760
        %v601 = vsub.f32 %v183, %v600
        %602 = vmatpush1.msra.mxu0 %v601
        %v603 = vand.u32 %v188, 4294901760
        %v604 = vsub.f32 %v188, %v603
        %605 = vmatprep.subr.mxu0 %v604
        %v606 = vand.u32 %v187, 4294901760
        %v607 = vsub.f32 %v187, %v606
        %608 = vmatpush1.msra.mxu0 %v607
        %v609 = vand.u32 %v192, 4294901760
        %v610 = vsub.f32 %v192, %v609
        %611 = vmatprep.subr.mxu0 %v610
        %v612 = vand.u32 %v191, 4294901760
        %v613 = vsub.f32 %v191, %v612
        %614 = vmatpush1.msra.mxu0 %v613
        %v615 = vand.u32 %v196, 4294901760
        %v616 = vsub.f32 %v196, %v615
        %617 = vmatprep.subr.mxu0 %v616
        %v618 = vand.u32 %v195, 4294901760
        %v619 = vsub.f32 %v195, %v618
        %620 = vmatpush1.msra.mxu0 %v619
        %v621 = vand.u32 %v200, 4294901760
        %v622 = vsub.f32 %v200, %v621
        %623 = vmatprep.subr.mxu0 %v622
        %v624 = vand.u32 %v199, 4294901760
        %v625 = vsub.f32 %v199, %v624
        %626 = vmatpush1.msra.mxu0 %v625
        %v627 = vand.u32 %v204, 4294901760
        %v628 = vsub.f32 %v204, %v627
        %629 = vmatprep.subr.mxu0 %v628
        %v630 = vand.u32 %v203, 4294901760
        %v631 = vsub.f32 %v203, %v630
        %632 = vmatpush1.msra.mxu0 %v631
        %v633 = vand.u32 %v208, 4294901760
        %v634 = vsub.f32 %v208, %v633
        %635 = vmatprep.subr.mxu0 %v634
        %v636 = vand.u32 %v207, 4294901760
        %v637 = vsub.f32 %v207, %v636
        %638 = vmatpush1.msra.mxu0 %v637
        %v639 = vand.u32 %v212, 4294901760
        %v640 = vsub.f32 %v212, %v639
        %641 = vmatprep.subr.mxu0 %v640
        %v642 = vand.u32 %v211, 4294901760
        %v643 = vsub.f32 %v211, %v642
        %644 = vmatpush1.msra.mxu0 %v643
        %v645 = vand.u32 %v216, 4294901760
        %v646 = vsub.f32 %v216, %v645
        %647 = vmatprep.subr.mxu0 %v646
        %v648 = vand.u32 %v215, 4294901760
        %v649 = vsub.f32 %v215, %v648
        %650 = vmatpush1.msra.mxu0 %v649
        %v651 = vand.u32 %v220, 4294901760
        %v652 = vsub.f32 %v220, %v651
        %653 = vmatprep.subr.mxu0 %v652
        %v654 = vand.u32 %v219, 4294901760
        %v655 = vsub.f32 %v219, %v654
        %656 = vmatpush1.msra.mxu0 %v655
        %v657 = vand.u32 %v224, 4294901760
        %v658 = vsub.f32 %v224, %v657
        %659 = vmatprep.subr.mxu0 %v658
        %v660 = vand.u32 %v223, 4294901760
        %v661 = vsub.f32 %v223, %v660
        %662 = vmatpush1.msra.mxu0 %v661
        %663 = vmatprep.subr.mxu0 0.0
        %664 = vmatpush1.msra.mxu0 0.0
        %665 = vmatprep.subr.mxu0 0.0
        %666 = vmatpush1.msra.mxu0 0.0
        %667 = vmatprep.subr.mxu0 0.0
        %668 = vmatpush1.msra.mxu0 0.0
        %669 = vmatprep.subr.mxu0 0.0
        %670 = vmatpush1.msra.mxu0 0.0
        %671 = vmatprep.subr.mxu0 0.0
        %672 = vmatpush1.msra.mxu0 0.0
        %673 = vmatprep.subr.mxu0 0.0
        %674 = vmatpush1.msra.mxu0 0.0
        %675 = vmatprep.subr.mxu0 0.0
        %676 = vmatpush1.msra.mxu0 0.0
        %677 = vmatprep.subr.mxu0 0.0
        %678 = vmatpush1.msra.mxu0 0.0
        %679 = vmatprep.subr.mxu0 0.0
        %680 = vmatpush1.msra.mxu0 0.0
        %681 = vmatprep.subr.mxu0 0.0
        %682 = vmatpush1.msra.mxu0 0.0
        %683 = vmatprep.subr.mxu0 0.0
        %684 = vmatpush1.msra.mxu0 0.0
        %685 = vmatprep.subr.mxu0 0.0
        %686 = vmatpush1.msra.mxu0 0.0
        %687 = vmatprep.subr.mxu0 0.0
        %688 = vmatpush1.msra.mxu0 0.0
        %689 = vmatprep.subr.mxu0 0.0
        %690 = vmatpush1.msra.mxu0 0.0
        %691 = vmatprep.subr.mxu0 0.0
        %692 = vmatpush1.msra.mxu0 0.0
        %693 = vmatprep.subr.mxu0 0.0
        %694 = vmatpush1.msra.mxu0 0.0
        %695 = vmatprep.mubr.f32.mxu0 0.0
        %v696 = vand.u32 %v162, 4294901760
        %v697 = vsub.f32 %v162, %v696
        %698 = vmatmul.mubr.f32.gmra.mrb[0].mxu0 %v697
        %v699 = vpop.f32.mrb[0].mxu0
        %v700 = vadd.f32 %v563, %v699
        %v701 = vpop.f32.mrb[0].mxu0
        %v702 = vadd.f32 %v565, %v701
        %703 = vdwg.mxu0
        %v704 = vand.u32 %v164, 4294901760
        %705 = vmatprep.subr.mxu0 %v704
        %v706 = vand.u32 %v163, 4294901760
        %707 = vmatpush1.msra.mxu0 %v706
        %v708 = vand.u32 %v168, 4294901760
        %709 = vmatprep.subr.mxu0 %v708
        %v710 = vand.u32 %v167, 4294901760
        %711 = vmatpush1.msra.mxu0 %v710
        %v712 = vand.u32 %v172, 4294901760
        %713 = vmatprep.subr.mxu0 %v712
        %v714 = vand.u32 %v171, 4294901760
        %715 = vmatpush1.msra.mxu0 %v714
        %v716 = vand.u32 %v176, 4294901760
        %717 = vmatprep.subr.mxu0 %v716
        %v718 = vand.u32 %v175, 4294901760
        %719 = vmatpush1.msra.mxu0 %v718
        %v720 = vand.u32 %v180, 4294901760
        %721 = vmatprep.subr.mxu0 %v720
        %v722 = vand.u32 %v179, 4294901760
        %723 = vmatpush1.msra.mxu0 %v722
        %v724 = vand.u32 %v184, 4294901760
        %725 = vmatprep.subr.mxu0 %v724
        %v726 = vand.u32 %v183, 4294901760
        %727 = vmatpush1.msra.mxu0 %v726
        %v728 = vand.u32 %v188, 4294901760
        %729 = vmatprep.subr.mxu0 %v728
        %v730 = vand.u32 %v187, 4294901760
        %731 = vmatpush1.msra.mxu0 %v730
        %v732 = vand.u32 %v192, 4294901760
        %733 = vmatprep.subr.mxu0 %v732
        %v734 = vand.u32 %v191, 4294901760
        %735 = vmatpush1.msra.mxu0 %v734
        %v736 = vand.u32 %v196, 4294901760
        %737 = vmatprep.subr.mxu0 %v736
        %v738 = vand.u32 %v195, 4294901760
        %739 = vmatpush1.msra.mxu0 %v738
        %v740 = vand.u32 %v200, 4294901760
        %741 = vmatprep.subr.mxu0 %v740
        %v742 = vand.u32 %v199, 4294901760
        %743 = vmatpush1.msra.mxu0 %v742
        %v744 = vand.u32 %v204, 4294901760
        %745 = vmatprep.subr.mxu0 %v744
        %v746 = vand.u32 %v203, 4294901760
        %747 = vmatpush1.msra.mxu0 %v746
        %v748 = vand.u32 %v208, 4294901760
        %749 = vmatprep.subr.mxu0 %v748
        %v750 = vand.u32 %v207, 4294901760
        %751 = vmatpush1.msra.mxu0 %v750
        %v752 = vand.u32 %v212, 4294901760
        %753 = vmatprep.subr.mxu0 %v752
        %v754 = vand.u32 %v211, 4294901760
        %755 = vmatpush1.msra.mxu0 %v754
        %v756 = vand.u32 %v216, 4294901760
        %757 = vmatprep.subr.mxu0 %v756
        %v758 = vand.u32 %v215, 4294901760
        %759 = vmatpush1.msra.mxu0 %v758
        %v760 = vand.u32 %v220, 4294901760
        %761 = vmatprep.subr.mxu0 %v760
        %v762 = vand.u32 %v219, 4294901760
        %763 = vmatpush1.msra.mxu0 %v762
        %v764 = vand.u32 %v224, 4294901760
        %765 = vmatprep.subr.mxu0 %v764
        %v766 = vand.u32 %v223, 4294901760
        %767 = vmatpush1.msra.mxu0 %v766
        %768 = vmatprep.subr.mxu0 0.0
        %769 = vmatpush1.msra.mxu0 0.0
        %770 = vmatprep.subr.mxu0 0.0
        %771 = vmatpush1.msra.mxu0 0.0
        %772 = vmatprep.subr.mxu0 0.0
        %773 = vmatpush1.msra.mxu0 0.0
        %774 = vmatprep.subr.mxu0 0.0
        %775 = vmatpush1.msra.mxu0 0.0
        %776 = vmatprep.subr.mxu0 0.0
        %777 = vmatpush1.msra.mxu0 0.0
        %778 = vmatprep.subr.mxu0 0.0
        %779 = vmatpush1.msra.mxu0 0.0
        %780 = vmatprep.subr.mxu0 0.0
        %781 = vmatpush1.msra.mxu0 0.0
        %782 = vmatprep.subr.mxu0 0.0
        %783 = vmatpush1.msra.mxu0 0.0
        %784 = vmatprep.subr.mxu0 0.0
        %785 = vmatpush1.msra.mxu0 0.0
        %786 = vmatprep.subr.mxu0 0.0
        %787 = vmatpush1.msra.mxu0 0.0
        %788 = vmatprep.subr.mxu0 0.0
        %789 = vmatpush1.msra.mxu0 0.0
        %790 = vmatprep.subr.mxu0 0.0
        %791 = vmatpush1.msra.mxu0 0.0
        %792 = vmatprep.subr.mxu0 0.0
        %793 = vmatpush1.msra.mxu0 0.0
        %794 = vmatprep.subr.mxu0 0.0
        %795 = vmatpush1.msra.mxu0 0.0
        %796 = vmatprep.subr.mxu0 0.0
        %797 = vmatpush1.msra.mxu0 0.0
        %798 = vmatprep.subr.mxu0 0.0
        %799 = vmatpush1.msra.mxu0 0.0
        %800 = vmatprep.mubr.f32.mxu0 0.0
        %v801 = vand.u32 %v162, 4294901760
        %v802 = vsub.f32 %v162, %v801
        %v803 = vand.u32 %v802, 4294901760
        %804 = vmatmul.mubr.f32.gmra.mrb[0].mxu0 %v803
        %v805 = vpop.f32.mrb[0].mxu0
        %v806 = vadd.f32 %v700, %v805
        %v807 = vpop.f32.mrb[0].mxu0
        %v808 = vadd.f32 %v702, %v807
        %809 = vdwg.mxu0
        %v810 = vand.u32 %v164, 4294901760
        %v811 = vsub.f32 %v164, %v810
        %v812 = vand.u32 %v811, 4294901760
        %813 = vmatprep.subr.mxu0 %v812
        %v814 = vand.u32 %v163, 4294901760
        %v815 = vsub.f32 %v163, %v814
        %v816 = vand.u32 %v815, 4294901760
        %817 = vmatpush1.msra.mxu0 %v816
        %v818 = vand.u32 %v168, 4294901760
        %v819 = vsub.f32 %v168, %v818
        %v820 = vand.u32 %v819, 4294901760
        %821 = vmatprep.subr.mxu0 %v820
        %v822 = vand.u32 %v167, 4294901760
        %v823 = vsub.f32 %v167, %v822
        %v824 = vand.u32 %v823, 4294901760
        %825 = vmatpush1.msra.mxu0 %v824
        %v826 = vand.u32 %v172, 4294901760
        %v827 = vsub.f32 %v172, %v826
        %v828 = vand.u32 %v827, 4294901760
        %829 = vmatprep.subr.mxu0 %v828
        %v830 = vand.u32 %v171, 4294901760
        %v831 = vsub.f32 %v171, %v830
        %v832 = vand.u32 %v831, 4294901760
        %833 = vmatpush1.msra.mxu0 %v832
        %v834 = vand.u32 %v176, 4294901760
        %v835 = vsub.f32 %v176, %v834
        %v836 = vand.u32 %v835, 4294901760
        %837 = vmatprep.subr.mxu0 %v836
        %v838 = vand.u32 %v175, 4294901760
        %v839 = vsub.f32 %v175, %v838
        %v840 = vand.u32 %v839, 4294901760
        %841 = vmatpush1.msra.mxu0 %v840
        %v842 = vand.u32 %v180, 4294901760
        %v843 = vsub.f32 %v180, %v842
        %v844 = vand.u32 %v843, 4294901760
        %845 = vmatprep.subr.mxu0 %v844
        %v846 = vand.u32 %v179, 4294901760
        %v847 = vsub.f32 %v179, %v846
        %v848 = vand.u32 %v847, 4294901760
        %849 = vmatpush1.msra.mxu0 %v848
        %v850 = vand.u32 %v184, 4294901760
        %v851 = vsub.f32 %v184, %v850
        %v852 = vand.u32 %v851, 4294901760
        %853 = vmatprep.subr.mxu0 %v852
        %v854 = vand.u32 %v183, 4294901760
        %v855 = vsub.f32 %v183, %v854
        %v856 = vand.u32 %v855, 4294901760
        %857 = vmatpush1.msra.mxu0 %v856
        %v858 = vand.u32 %v188, 4294901760
        %v859 = vsub.f32 %v188, %v858
        %v860 = vand.u32 %v859, 4294901760
        %861 = vmatprep.subr.mxu0 %v860
        %v862 = vand.u32 %v187, 4294901760
        %v863 = vsub.f32 %v187, %v862
        %v864 = vand.u32 %v863, 4294901760
        %865 = vmatpush1.msra.mxu0 %v864
        %v866 = vand.u32 %v192, 4294901760
        %v867 = vsub.f32 %v192, %v866
        %v868 = vand.u32 %v867, 4294901760
        %869 = vmatprep.subr.mxu0 %v868
        %v870 = vand.u32 %v191, 4294901760
        %v871 = vsub.f32 %v191, %v870
        %v872 = vand.u32 %v871, 4294901760
        %873 = vmatpush1.msra.mxu0 %v872
        %v874 = vand.u32 %v196, 4294901760
        %v875 = vsub.f32 %v196, %v874
        %v876 = vand.u32 %v875, 4294901760
        %877 = vmatprep.subr.mxu0 %v876
        %v878 = vand.u32 %v195, 4294901760
        %v879 = vsub.f32 %v195, %v878
        %v880 = vand.u32 %v879, 4294901760
        %881 = vmatpush1.msra.mxu0 %v880
        %v882 = vand.u32 %v200, 4294901760
        %v883 = vsub.f32 %v200, %v882
        %v884 = vand.u32 %v883, 4294901760
        %885 = vmatprep.subr.mxu0 %v884
        %v886 = vand.u32 %v199, 4294901760
        %v887 = vsub.f32 %v199, %v886
        %v888 = vand.u32 %v887, 4294901760
        %889 = vmatpush1.msra.mxu0 %v888
        %v890 = vand.u32 %v204, 4294901760
        %v891 = vsub.f32 %v204, %v890
        %v892 = vand.u32 %v891, 4294901760
        %893 = vmatprep.subr.mxu0 %v892
        %v894 = vand.u32 %v203, 4294901760
        %v895 = vsub.f32 %v203, %v894
        %v896 = vand.u32 %v895, 4294901760
        %897 = vmatpush1.msra.mxu0 %v896
        %v898 = vand.u32 %v208, 4294901760
        %v899 = vsub.f32 %v208, %v898
        %v900 = vand.u32 %v899, 4294901760
        %901 = vmatprep.subr.mxu0 %v900
        %v902 = vand.u32 %v207, 4294901760
        %v903 = vsub.f32 %v207, %v902
        %v904 = vand.u32 %v903, 4294901760
        %905 = vmatpush1.msra.mxu0 %v904
        %v906 = vand.u32 %v212, 4294901760
        %v907 = vsub.f32 %v212, %v906
        %v908 = vand.u32 %v907, 4294901760
        %909 = vmatprep.subr.mxu0 %v908
        %v910 = vand.u32 %v211, 4294901760
        %v911 = vsub.f32 %v211, %v910
        %v912 = vand.u32 %v911, 4294901760
        %913 = vmatpush1.msra.mxu0 %v912
        %v914 = vand.u32 %v216, 4294901760
        %v915 = vsub.f32 %v216, %v914
        %v916 = vand.u32 %v915, 4294901760
        %917 = vmatprep.subr.mxu0 %v916
        %v918 = vand.u32 %v215, 4294901760
        %v919 = vsub.f32 %v215, %v918
        %v920 = vand.u32 %v919, 4294901760
        %921 = vmatpush1.msra.mxu0 %v920
        %v922 = vand.u32 %v220, 4294901760
        %v923 = vsub.f32 %v220, %v922
        %v924 = vand.u32 %v923, 4294901760
        %925 = vmatprep.subr.mxu0 %v924
        %v926 = vand.u32 %v219, 4294901760
        %v927 = vsub.f32 %v219, %v926
        %v928 = vand.u32 %v927, 4294901760
        %929 = vmatpush1.msra.mxu0 %v928
        %v930 = vand.u32 %v224, 4294901760
        %v931 = vsub.f32 %v224, %v930
        %v932 = vand.u32 %v931, 4294901760
        %933 = vmatprep.subr.mxu0 %v932
        %v934 = vand.u32 %v223, 4294901760
        %v935 = vsub.f32 %v223, %v934
        %v936 = vand.u32 %v935, 4294901760
        %937 = vmatpush1.msra.mxu0 %v936
        %938 = vmatprep.subr.mxu0 0.0
        %939 = vmatpush1.msra.mxu0 0.0
        %940 = vmatprep.subr.mxu0 0.0
        %941 = vmatpush1.msra.mxu0 0.0
        %942 = vmatprep.subr.mxu0 0.0
        %943 = vmatpush1.msra.mxu0 0.0
        %944 = vmatprep.subr.mxu0 0.0
        %945 = vmatpush1.msra.mxu0 0.0
        %946 = vmatprep.subr.mxu0 0.0
        %947 = vmatpush1.msra.mxu0 0.0
        %948 = vmatprep.subr.mxu0 0.0
        %949 = vmatpush1.msra.mxu0 0.0
        %950 = vmatprep.subr.mxu0 0.0
        %951 = vmatpush1.msra.mxu0 0.0
        %952 = vmatprep.subr.mxu0 0.0
        %953 = vmatpush1.msra.mxu0 0.0
        %954 = vmatprep.subr.mxu0 0.0
        %955 = vmatpush1.msra.mxu0 0.0
        %956 = vmatprep.subr.mxu0 0.0
        %957 = vmatpush1.msra.mxu0 0.0
        %958 = vmatprep.subr.mxu0 0.0
        %959 = vmatpush1.msra.mxu0 0.0
        %960 = vmatprep.subr.mxu0 0.0
        %961 = vmatpush1.msra.mxu0 0.0
        %962 = vmatprep.subr.mxu0 0.0
        %963 = vmatpush1.msra.mxu0 0.0
        %964 = vmatprep.subr.mxu0 0.0
        %965 = vmatpush1.msra.mxu0 0.0
        %966 = vmatprep.subr.mxu0 0.0
        %967 = vmatpush1.msra.mxu0 0.0
        %968 = vmatprep.subr.mxu0 0.0
        %969 = vmatpush1.msra.mxu0 0.0
        %970 = vmatprep.mubr.f32.mxu0 0.0
        %v971 = vand.u32 %v162, 4294901760
        %972 = vmatmul.mubr.f32.gmra.mrb[0].mxu0 %v971
        %v973 = vpop.f32.mrb[0].mxu0
        %v974 = vadd.f32 %v806, %v973
        %v975 = vpop.f32.mrb[0].mxu0
        %v976 = vadd.f32 %v808, %v975
        %977 = vdwg.mxu0
        %v978 = vand.u32 %v164, 4294901760
        %979 = vmatprep.subr.mxu0 %v978
        %v980 = vand.u32 %v163, 4294901760
        %981 = vmatpush1.msra.mxu0 %v980
        %v982 = vand.u32 %v168, 4294901760
        %983 = vmatprep.subr.mxu0 %v982
        %v984 = vand.u32 %v167, 4294901760
        %985 = vmatpush1.msra.mxu0 %v984
        %v986 = vand.u32 %v172, 4294901760
        %987 = vmatprep.subr.mxu0 %v986
        %v988 = vand.u32 %v171, 4294901760
        %989 = vmatpush1.msra.mxu0 %v988
        %v990 = vand.u32 %v176, 4294901760
        %991 = vmatprep.subr.mxu0 %v990
        %v992 = vand.u32 %v175, 4294901760
        %993 = vmatpush1.msra.mxu0 %v992
        %v994 = vand.u32 %v180, 4294901760
        %995 = vmatprep.subr.mxu0 %v994
        %v996 = vand.u32 %v179, 4294901760
        %997 = vmatpush1.msra.mxu0 %v996
        %v998 = vand.u32 %v184, 4294901760
        %999 = vmatprep.subr.mxu0 %v998
        %v1000 = vand.u32 %v183, 4294901760
        %1001 = vmatpush1.msra.mxu0 %v1000
        %v1002 = vand.u32 %v188, 4294901760
        %1003 = vmatprep.subr.mxu0 %v1002
        %v1004 = vand.u32 %v187, 4294901760
        %1005 = vmatpush1.msra.mxu0 %v1004
        %v1006 = vand.u32 %v192, 4294901760
        %1007 = vmatprep.subr.mxu0 %v1006
        %v1008 = vand.u32 %v191, 4294901760
        %1009 = vmatpush1.msra.mxu0 %v1008
        %v1010 = vand.u32 %v196, 4294901760
        %1011 = vmatprep.subr.mxu0 %v1010
        %v1012 = vand.u32 %v195, 4294901760
        %1013 = vmatpush1.msra.mxu0 %v1012
        %v1014 = vand.u32 %v200, 4294901760
        %1015 = vmatprep.subr.mxu0 %v1014
        %v1016 = vand.u32 %v199, 4294901760
        %1017 = vmatpush1.msra.mxu0 %v1016
        %v1018 = vand.u32 %v204, 4294901760
        %1019 = vmatprep.subr.mxu0 %v1018
        %v1020 = vand.u32 %v203, 4294901760
        %1021 = vmatpush1.msra.mxu0 %v1020
        %v1022 = vand.u32 %v208, 4294901760
        %1023 = vmatprep.subr.mxu0 %v1022
        %v1024 = vand.u32 %v207, 4294901760
        %1025 = vmatpush1.msra.mxu0 %v1024
        %v1026 = vand.u32 %v212, 4294901760
        %1027 = vmatprep.subr.mxu0 %v1026
        %v1028 = vand.u32 %v211, 4294901760
        %1029 = vmatpush1.msra.mxu0 %v1028
        %v1030 = vand.u32 %v216, 4294901760
        %1031 = vmatprep.subr.mxu0 %v1030
        %v1032 = vand.u32 %v215, 4294901760
        %1033 = vmatpush1.msra.mxu0 %v1032
        %v1034 = vand.u32 %v220, 4294901760
        %1035 = vmatprep.subr.mxu0 %v1034
        %v1036 = vand.u32 %v219, 4294901760
        %1037 = vmatpush1.msra.mxu0 %v1036
        %v1038 = vand.u32 %v224, 4294901760
        %1039 = vmatprep.subr.mxu0 %v1038
        %v1040 = vand.u32 %v223, 4294901760
        %1041 = vmatpush1.msra.mxu0 %v1040
        %1042 = vmatprep.subr.mxu0 0.0
        %1043 = vmatpush1.msra.mxu0 0.0
        %1044 = vmatprep.subr.mxu0 0.0
        %1045 = vmatpush1.msra.mxu0 0.0
        %1046 = vmatprep.subr.mxu0 0.0
        %1047 = vmatpush1.msra.mxu0 0.0
        %1048 = vmatprep.subr.mxu0 0.0
        %1049 = vmatpush1.msra.mxu0 0.0
        %1050 = vmatprep.subr.mxu0 0.0
        %1051 = vmatpush1.msra.mxu0 0.0
        %1052 = vmatprep.subr.mxu0 0.0
        %1053 = vmatpush1.msra.mxu0 0.0
        %1054 = vmatprep.subr.mxu0 0.0
        %1055 = vmatpush1.msra.mxu0 0.0
        %1056 = vmatprep.subr.mxu0 0.0
        %1057 = vmatpush1.msra.mxu0 0.0
        %1058 = vmatprep.subr.mxu0 0.0
        %1059 = vmatpush1.msra.mxu0 0.0
        %1060 = vmatprep.subr.mxu0 0.0
        %1061 = vmatpush1.msra.mxu0 0.0
        %1062 = vmatprep.subr.mxu0 0.0
        %1063 = vmatpush1.msra.mxu0 0.0
        %1064 = vmatprep.subr.mxu0 0.0
        %1065 = vmatpush1.msra.mxu0 0.0
        %1066 = vmatprep.subr.mxu0 0.0
        %1067 = vmatpush1.msra.mxu0 0.0
        %1068 = vmatprep.subr.mxu0 0.0
        %1069 = vmatpush1.msra.mxu0 0.0
        %1070 = vmatprep.subr.mxu0 0.0
        %1071 = vmatpush1.msra.mxu0 0.0
        %1072 = vmatprep.subr.mxu0 0.0
        %1073 = vmatpush1.msra.mxu0 0.0
        %1074 = vmatprep.mubr.f32.mxu0 0.0
        %v1075 = vand.u32 %v162, 4294901760
        %1076 = vmatmul.mubr.f32.gmra.mrb[0].mxu0 %v1075
        %v1077 = vpop.f32.mrb[0].mxu0
        %v1078 = vadd.f32 %v974, %v1077
        %v1079 = vpop.f32.mrb[0].mxu0
        %v1080 = vadd.f32 %v976, %v1079
        %1081 = vdwg.mxu0
        %v1082 = vand.u32 %v166, 4294901760
        %1083 = vmatprep.subr.mxu0 %v1082
        %v1084 = vand.u32 %v165, 4294901760
        %1085 = vmatpush1.msra.mxu0 %v1084
        %v1086 = vand.u32 %v170, 4294901760
        %1087 = vmatprep.subr.mxu0 %v1086
        %v1088 = vand.u32 %v169, 4294901760
        %1089 = vmatpush1.msra.mxu0 %v1088
        %v1090 = vand.u32 %v174, 4294901760
        %1091 = vmatprep.subr.mxu0 %v1090
        %v1092 = vand.u32 %v173, 4294901760
        %1093 = vmatpush1.msra.mxu0 %v1092
        %v1094 = vand.u32 %v178, 4294901760
        %1095 = vmatprep.subr.mxu0 %v1094
        %v1096 = vand.u32 %v177, 4294901760
        %1097 = vmatpush1.msra.mxu0 %v1096
        %v1098 = vand.u32 %v182, 4294901760
        %1099 = vmatprep.subr.mxu0 %v1098
        %v1100 = vand.u32 %v181, 4294901760
        %1101 = vmatpush1.msra.mxu0 %v1100
        %v1102 = vand.u32 %v186, 4294901760
        %1103 = vmatprep.subr.mxu0 %v1102
        %v1104 = vand.u32 %v185, 4294901760
        %1105 = vmatpush1.msra.mxu0 %v1104
        %v1106 = vand.u32 %v190, 4294901760
        %1107 = vmatprep.subr.mxu0 %v1106
        %v1108 = vand.u32 %v189, 4294901760
        %1109 = vmatpush1.msra.mxu0 %v1108
        %v1110 = vand.u32 %v194, 4294901760
        %1111 = vmatprep.subr.mxu0 %v1110
        %v1112 = vand.u32 %v193, 4294901760
        %1113 = vmatpush1.msra.mxu0 %v1112
        %v1114 = vand.u32 %v198, 4294901760
        %1115 = vmatprep.subr.mxu0 %v1114
        %v1116 = vand.u32 %v197, 4294901760
        %1117 = vmatpush1.msra.mxu0 %v1116
        %v1118 = vand.u32 %v202, 4294901760
        %1119 = vmatprep.subr.mxu0 %v1118
        %v1120 = vand.u32 %v201, 4294901760
        %1121 = vmatpush1.msra.mxu0 %v1120
        %v1122 = vand.u32 %v206, 4294901760
        %1123 = vmatprep.subr.mxu0 %v1122
        %v1124 = vand.u32 %v205, 4294901760
        %1125 = vmatpush1.msra.mxu0 %v1124
        %v1126 = vand.u32 %v210, 4294901760
        %1127 = vmatprep.subr.mxu0 %v1126
        %v1128 = vand.u32 %v209, 4294901760
        %1129 = vmatpush1.msra.mxu0 %v1128
        %v1130 = vand.u32 %v214, 4294901760
        %1131 = vmatprep.subr.mxu0 %v1130
        %v1132 = vand.u32 %v213, 4294901760
        %1133 = vmatpush1.msra.mxu0 %v1132
        %v1134 = vand.u32 %v218, 4294901760
        %1135 = vmatprep.subr.mxu0 %v1134
        %v1136 = vand.u32 %v217, 4294901760
        %1137 = vmatpush1.msra.mxu0 %v1136
        %v1138 = vand.u32 %v222, 4294901760
        %1139 = vmatprep.subr.mxu0 %v1138
        %v1140 = vand.u32 %v221, 4294901760
        %1141 = vmatpush1.msra.mxu0 %v1140
        %v1142 = vand.u32 %v226, 4294901760
        %1143 = vmatprep.subr.mxu0 %v1142
        %v1144 = vand.u32 %v225, 4294901760
        %1145 = vmatpush1.msra.mxu0 %v1144
        %1146 = vmatprep.subr.mxu0 0.0
        %1147 = vmatpush1.msra.mxu0 0.0
        %1148 = vmatprep.subr.mxu0 0.0
        %1149 = vmatpush1.msra.mxu0 0.0
        %1150 = vmatprep.subr.mxu0 0.0
        %1151 = vmatpush1.msra.mxu0 0.0
        %1152 = vmatprep.subr.mxu0 0.0
        %1153 = vmatpush1.msra.mxu0 0.0
        %1154 = vmatprep.subr.mxu0 0.0
        %1155 = vmatpush1.msra.mxu0 0.0
        %1156 = vmatprep.subr.mxu0 0.0
        %1157 = vmatpush1.msra.mxu0 0.0
        %1158 = vmatprep.subr.mxu0 0.0
        %1159 = vmatpush1.msra.mxu0 0.0
        %1160 = vmatprep.subr.mxu0 0.0
        %1161 = vmatpush1.msra.mxu0 0.0
        %1162 = vmatprep.subr.mxu0 0.0
        %1163 = vmatpush1.msra.mxu0 0.0
        %1164 = vmatprep.subr.mxu0 0.0
        %1165 = vmatpush1.msra.mxu0 0.0
        %1166 = vmatprep.subr.mxu0 0.0
        %1167 = vmatpush1.msra.mxu0 0.0
        %1168 = vmatprep.subr.mxu0 0.0
        %1169 = vmatpush1.msra.mxu0 0.0
        %1170 = vmatprep.subr.mxu0 0.0
        %1171 = vmatpush1.msra.mxu0 0.0
        %1172 = vmatprep.subr.mxu0 0.0
        %1173 = vmatpush1.msra.mxu0 0.0
        %1174 = vmatprep.subr.mxu0 0.0
        %1175 = vmatpush1.msra.mxu0 0.0
        %1176 = vmatprep.subr.mxu0 0.0
        %1177 = vmatpush1.msra.mxu0 0.0
        %1178 = vmatprep.mubr.f32.mxu0 0.0
        %v1179 = vand.u32 %v162, 4294901760
        %v1180 = vsub.f32 %v162, %v1179
        %v1181 = vand.u32 %v1180, 4294901760
        %v1182 = vsub.f32 %v1180, %v1181
        %v1183 = vand.u32 %v1182, 4294901760
        %1184 = vmatmul.mubr.f32.gmra.mrb[0].mxu0 %v1183
        %v1185 = vpop.f32.mrb[0].mxu0
        %v1186 = vadd.f32 0.0, %v1185
        %v1187 = vpop.f32.mrb[0].mxu0
        %v1188 = vadd.f32 0.0, %v1187
        %1189 = vdwg.mxu0
        %v1190 = vand.u32 %v166, 4294901760
        %v1191 = vsub.f32 %v166, %v1190
        %v1192 = vand.u32 %v1191, 4294901760
        %v1193 = vsub.f32 %v1191, %v1192
        %v1194 = vand.u32 %v1193, 4294901760
        %1195 = vmatprep.subr.mxu0 %v1194
        %v1196 = vand.u32 %v165, 4294901760
        %v1197 = vsub.f32 %v165, %v1196
        %v1198 = vand.u32 %v1197, 4294901760
        %v1199 = vsub.f32 %v1197, %v1198
        %v1200 = vand.u32 %v1199, 4294901760
        %1201 = vmatpush1.msra.mxu0 %v1200
        %v1202 = vand.u32 %v170, 4294901760
        %v1203 = vsub.f32 %v170, %v1202
        %v1204 = vand.u32 %v1203, 4294901760
        %v1205 = vsub.f32 %v1203, %v1204
        %v1206 = vand.u32 %v1205, 4294901760
        %1207 = vmatprep.subr.mxu0 %v1206
        %v1208 = vand.u32 %v169, 4294901760
        %v1209 = vsub.f32 %v169, %v1208
        %v1210 = vand.u32 %v1209, 4294901760
        %v1211 = vsub.f32 %v1209, %v1210
        %v1212 = vand.u32 %v1211, 4294901760
        %1213 = vmatpush1.msra.mxu0 %v1212
        %v1214 = vand.u32 %v174, 4294901760
        %v1215 = vsub.f32 %v174, %v1214
        %v1216 = vand.u32 %v1215, 4294901760
        %v1217 = vsub.f32 %v1215, %v1216
        %v1218 = vand.u32 %v1217, 4294901760
        %1219 = vmatprep.subr.mxu0 %v1218
        %v1220 = vand.u32 %v173, 4294901760
        %v1221 = vsub.f32 %v173, %v1220
        %v1222 = vand.u32 %v1221, 4294901760
        %v1223 = vsub.f32 %v1221, %v1222
        %v1224 = vand.u32 %v1223, 4294901760
        %1225 = vmatpush1.msra.mxu0 %v1224
        %v1226 = vand.u32 %v178, 4294901760
        %v1227 = vsub.f32 %v178, %v1226
        %v1228 = vand.u32 %v1227, 4294901760
        %v1229 = vsub.f32 %v1227, %v1228
        %v1230 = vand.u32 %v1229, 4294901760
        %1231 = vmatprep.subr.mxu0 %v1230
        %v1232 = vand.u32 %v177, 4294901760
        %v1233 = vsub.f32 %v177, %v1232
        %v1234 = vand.u32 %v1233, 4294901760
        %v1235 = vsub.f32 %v1233, %v1234
        %v1236 = vand.u32 %v1235, 4294901760
        %1237 = vmatpush1.msra.mxu0 %v1236
        %v1238 = vand.u32 %v182, 4294901760
        %v1239 = vsub.f32 %v182, %v1238
        %v1240 = vand.u32 %v1239, 4294901760
        %v1241 = vsub.f32 %v1239, %v1240
        %v1242 = vand.u32 %v1241, 4294901760
        %1243 = vmatprep.subr.mxu0 %v1242
        %v1244 = vand.u32 %v181, 4294901760
        %v1245 = vsub.f32 %v181, %v1244
        %v1246 = vand.u32 %v1245, 4294901760
        %v1247 = vsub.f32 %v1245, %v1246
        %v1248 = vand.u32 %v1247, 4294901760
        %1249 = vmatpush1.msra.mxu0 %v1248
        %v1250 = vand.u32 %v186, 4294901760
        %v1251 = vsub.f32 %v186, %v1250
        %v1252 = vand.u32 %v1251, 4294901760
        %v1253 = vsub.f32 %v1251, %v1252
        %v1254 = vand.u32 %v1253, 4294901760
        %1255 = vmatprep.subr.mxu0 %v1254
        %v1256 = vand.u32 %v185, 4294901760
        %v1257 = vsub.f32 %v185, %v1256
        %v1258 = vand.u32 %v1257, 4294901760
        %v1259 = vsub.f32 %v1257, %v1258
        %v1260 = vand.u32 %v1259, 4294901760
        %1261 = vmatpush1.msra.mxu0 %v1260
        %v1262 = vand.u32 %v190, 4294901760
        %v1263 = vsub.f32 %v190, %v1262
        %v1264 = vand.u32 %v1263, 4294901760
        %v1265 = vsub.f32 %v1263, %v1264
        %v1266 = vand.u32 %v1265, 4294901760
        %1267 = vmatprep.subr.mxu0 %v1266
        %v1268 = vand.u32 %v189, 4294901760
        %v1269 = vsub.f32 %v189, %v1268
        %v1270 = vand.u32 %v1269, 4294901760
        %v1271 = vsub.f32 %v1269, %v1270
        %v1272 = vand.u32 %v1271, 4294901760
        %1273 = vmatpush1.msra.mxu0 %v1272
        %v1274 = vand.u32 %v194, 4294901760
        %v1275 = vsub.f32 %v194, %v1274
        %v1276 = vand.u32 %v1275, 4294901760
        %v1277 = vsub.f32 %v1275, %v1276
        %v1278 = vand.u32 %v1277, 4294901760
        %1279 = vmatprep.subr.mxu0 %v1278
        %v1280 = vand.u32 %v193, 4294901760
        %v1281 = vsub.f32 %v193, %v1280
        %v1282 = vand.u32 %v1281, 4294901760
        %v1283 = vsub.f32 %v1281, %v1282
        %v1284 = vand.u32 %v1283, 4294901760
        %1285 = vmatpush1.msra.mxu0 %v1284
        %v1286 = vand.u32 %v198, 4294901760
        %v1287 = vsub.f32 %v198, %v1286
        %v1288 = vand.u32 %v1287, 4294901760
        %v1289 = vsub.f32 %v1287, %v1288
        %v1290 = vand.u32 %v1289, 4294901760
        %1291 = vmatprep.subr.mxu0 %v1290
        %v1292 = vand.u32 %v197, 4294901760
        %v1293 = vsub.f32 %v197, %v1292
        %v1294 = vand.u32 %v1293, 4294901760
        %v1295 = vsub.f32 %v1293, %v1294
        %v1296 = vand.u32 %v1295, 4294901760
        %1297 = vmatpush1.msra.mxu0 %v1296
        %v1298 = vand.u32 %v202, 4294901760
        %v1299 = vsub.f32 %v202, %v1298
        %v1300 = vand.u32 %v1299, 4294901760
        %v1301 = vsub.f32 %v1299, %v1300
        %v1302 = vand.u32 %v1301, 4294901760
        %1303 = vmatprep.subr.mxu0 %v1302
        %v1304 = vand.u32 %v201, 4294901760
        %v1305 = vsub.f32 %v201, %v1304
        %v1306 = vand.u32 %v1305, 4294901760
        %v1307 = vsub.f32 %v1305, %v1306
        %v1308 = vand.u32 %v1307, 4294901760
        %1309 = vmatpush1.msra.mxu0 %v1308
        %v1310 = vand.u32 %v206, 4294901760
        %v1311 = vsub.f32 %v206, %v1310
        %v1312 = vand.u32 %v1311, 4294901760
        %v1313 = vsub.f32 %v1311, %v1312
        %v1314 = vand.u32 %v1313, 4294901760
        %1315 = vmatprep.subr.mxu0 %v1314
        %v1316 = vand.u32 %v205, 4294901760
        %v1317 = vsub.f32 %v205, %v1316
        %v1318 = vand.u32 %v1317, 4294901760
        %v1319 = vsub.f32 %v1317, %v1318
        %v1320 = vand.u32 %v1319, 4294901760
        %1321 = vmatpush1.msra.mxu0 %v1320
        %v1322 = vand.u32 %v210, 4294901760
        %v1323 = vsub.f32 %v210, %v1322
        %v1324 = vand.u32 %v1323, 4294901760
        %v1325 = vsub.f32 %v1323, %v1324
        %v1326 = vand.u32 %v1325, 4294901760
        %1327 = vmatprep.subr.mxu0 %v1326
        %v1328 = vand.u32 %v209, 4294901760
        %v1329 = vsub.f32 %v209, %v1328
        %v1330 = vand.u32 %v1329, 4294901760
        %v1331 = vsub.f32 %v1329, %v1330
        %v1332 = vand.u32 %v1331, 4294901760
        %1333 = vmatpush1.msra.mxu0 %v1332
        %v1334 = vand.u32 %v214, 4294901760
        %v1335 = vsub.f32 %v214, %v1334
        %v1336 = vand.u32 %v1335, 4294901760
        %v1337 = vsub.f32 %v1335, %v1336
        %v1338 = vand.u32 %v1337, 4294901760
        %1339 = vmatprep.subr.mxu0 %v1338
        %v1340 = vand.u32 %v213, 4294901760
        %v1341 = vsub.f32 %v213, %v1340
        %v1342 = vand.u32 %v1341, 4294901760
        %v1343 = vsub.f32 %v1341, %v1342
        %v1344 = vand.u32 %v1343, 4294901760
        %1345 = vmatpush1.msra.mxu0 %v1344
        %v1346 = vand.u32 %v218, 4294901760
        %v1347 = vsub.f32 %v218, %v1346
        %v1348 = vand.u32 %v1347, 4294901760
        %v1349 = vsub.f32 %v1347, %v1348
        %v1350 = vand.u32 %v1349, 4294901760
        %1351 = vmatprep.subr.mxu0 %v1350
        %v1352 = vand.u32 %v217, 4294901760
        %v1353 = vsub.f32 %v217, %v1352
        %v1354 = vand.u32 %v1353, 4294901760
        %v1355 = vsub.f32 %v1353, %v1354
        %v1356 = vand.u32 %v1355, 4294901760
        %1357 = vmatpush1.msra.mxu0 %v1356
        %v1358 = vand.u32 %v222, 4294901760
        %v1359 = vsub.f32 %v222, %v1358
        %v1360 = vand.u32 %v1359, 4294901760
        %v1361 = vsub.f32 %v1359, %v1360
        %v1362 = vand.u32 %v1361, 4294901760
        %1363 = vmatprep.subr.mxu0 %v1362
        %v1364 = vand.u32 %v221, 4294901760
        %v1365 = vsub.f32 %v221, %v1364
        %v1366 = vand.u32 %v1365, 4294901760
        %v1367 = vsub.f32 %v1365, %v1366
        %v1368 = vand.u32 %v1367, 4294901760
        %1369 = vmatpush1.msra.mxu0 %v1368
        %v1370 = vand.u32 %v226, 4294901760
        %v1371 = vsub.f32 %v226, %v1370
        %v1372 = vand.u32 %v1371, 4294901760
        %v1373 = vsub.f32 %v1371, %v1372
        %v1374 = vand.u32 %v1373, 4294901760
        %1375 = vmatprep.subr.mxu0 %v1374
        %v1376 = vand.u32 %v225, 4294901760
        %v1377 = vsub.f32 %v225, %v1376
        %v1378 = vand.u32 %v1377, 4294901760
        %v1379 = vsub.f32 %v1377, %v1378
        %v1380 = vand.u32 %v1379, 4294901760
        %1381 = vmatpush1.msra.mxu0 %v1380
        %1382 = vmatprep.subr.mxu0 0.0
        %1383 = vmatpush1.msra.mxu0 0.0
        %1384 = vmatprep.subr.mxu0 0.0
        %1385 = vmatpush1.msra.mxu0 0.0
        %1386 = vmatprep.subr.mxu0 0.0
        %1387 = vmatpush1.msra.mxu0 0.0
        %1388 = vmatprep.subr.mxu0 0.0
        %1389 = vmatpush1.msra.mxu0 0.0
        %1390 = vmatprep.subr.mxu0 0.0
        %1391 = vmatpush1.msra.mxu0 0.0
        %1392 = vmatprep.subr.mxu0 0.0
        %1393 = vmatpush1.msra.mxu0 0.0
        %1394 = vmatprep.subr.mxu0 0.0
        %1395 = vmatpush1.msra.mxu0 0.0
        %1396 = vmatprep.subr.mxu0 0.0
        %1397 = vmatpush1.msra.mxu0 0.0
        %1398 = vmatprep.subr.mxu0 0.0
        %1399 = vmatpush1.msra.mxu0 0.0
        %1400 = vmatprep.subr.mxu0 0.0
        %1401 = vmatpush1.msra.mxu0 0.0
        %1402 = vmatprep.subr.mxu0 0.0
        %1403 = vmatpush1.msra.mxu0 0.0
        %1404 = vmatprep.subr.mxu0 0.0
        %1405 = vmatpush1.msra.mxu0 0.0
        %1406 = vmatprep.subr.mxu0 0.0
        %1407 = vmatpush1.msra.mxu0 0.0
        %1408 = vmatprep.subr.mxu0 0.0
        %1409 = vmatpush1.msra.mxu0 0.0
        %1410 = vmatprep.subr.mxu0 0.0
        %1411 = vmatpush1.msra.mxu0 0.0
        %1412 = vmatprep.subr.mxu0 0.0
        %1413 = vmatpush1.msra.mxu0 0.0
        %1414 = vmatprep.mubr.f32.mxu0 0.0
        %v1415 = vand.u32 %v162, 4294901760
        %1416 = vmatmul.mubr.f32.gmra.mrb[0].mxu0 %v1415
        %v1417 = vpop.f32.mrb[0].mxu0
        %v1418 = vadd.f32 %v1186, %v1417
        %v1419 = vpop.f32.mrb[0].mxu0
        %v1420 = vadd.f32 %v1188, %v1419
        %1421 = vdwg.mxu0
        %v1422 = vand.u32 %v166, 4294901760
        %v1423 = vsub.f32 %v166, %v1422
        %1424 = vmatprep.subr.mxu0 %v1423
        %v1425 = vand.u32 %v165, 4294901760
        %v1426 = vsub.f32 %v165, %v1425
        %1427 = vmatpush1.msra.mxu0 %v1426
        %v1428 = vand.u32 %v170, 4294901760
        %v1429 = vsub.f32 %v170, %v1428
        %1430 = vmatprep.subr.mxu0 %v1429
        %v1431 = vand.u32 %v169, 4294901760
        %v1432 = vsub.f32 %v169, %v1431
        %1433 = vmatpush1.msra.mxu0 %v1432
        %v1434 = vand.u32 %v174, 4294901760
        %v1435 = vsub.f32 %v174, %v1434
        %1436 = vmatprep.subr.mxu0 %v1435
        %v1437 = vand.u32 %v173, 4294901760
        %v1438 = vsub.f32 %v173, %v1437
        %1439 = vmatpush1.msra.mxu0 %v1438
        %v1440 = vand.u32 %v178, 4294901760
        %v1441 = vsub.f32 %v178, %v1440
        %1442 = vmatprep.subr.mxu0 %v1441
        %v1443 = vand.u32 %v177, 4294901760
        %v1444 = vsub.f32 %v177, %v1443
        %1445 = vmatpush1.msra.mxu0 %v1444
        %v1446 = vand.u32 %v182, 4294901760
        %v1447 = vsub.f32 %v182, %v1446
        %1448 = vmatprep.subr.mxu0 %v1447
        %v1449 = vand.u32 %v181, 4294901760
        %v1450 = vsub.f32 %v181, %v1449
        %1451 = vmatpush1.msra.mxu0 %v1450
        %v1452 = vand.u32 %v186, 4294901760
        %v1453 = vsub.f32 %v186, %v1452
        %1454 = vmatprep.subr.mxu0 %v1453
        %v1455 = vand.u32 %v185, 4294901760
        %v1456 = vsub.f32 %v185, %v1455
        %1457 = vmatpush1.msra.mxu0 %v1456
        %v1458 = vand.u32 %v190, 4294901760
        %v1459 = vsub.f32 %v190, %v1458
        %1460 = vmatprep.subr.mxu0 %v1459
        %v1461 = vand.u32 %v189, 4294901760
        %v1462 = vsub.f32 %v189, %v1461
        %1463 = vmatpush1.msra.mxu0 %v1462
        %v1464 = vand.u32 %v194, 4294901760
        %v1465 = vsub.f32 %v194, %v1464
        %1466 = vmatprep.subr.mxu0 %v1465
        %v1467 = vand.u32 %v193, 4294901760
        %v1468 = vsub.f32 %v193, %v1467
        %1469 = vmatpush1.msra.mxu0 %v1468
        %v1470 = vand.u32 %v198, 4294901760
        %v1471 = vsub.f32 %v198, %v1470
        %1472 = vmatprep.subr.mxu0 %v1471
        %v1473 = vand.u32 %v197, 4294901760
        %v1474 = vsub.f32 %v197, %v1473
        %1475 = vmatpush1.msra.mxu0 %v1474
        %v1476 = vand.u32 %v202, 4294901760
        %v1477 = vsub.f32 %v202, %v1476
        %1478 = vmatprep.subr.mxu0 %v1477
        %v1479 = vand.u32 %v201, 4294901760
        %v1480 = vsub.f32 %v201, %v1479
        %1481 = vmatpush1.msra.mxu0 %v1480
        %v1482 = vand.u32 %v206, 4294901760
        %v1483 = vsub.f32 %v206, %v1482
        %1484 = vmatprep.subr.mxu0 %v1483
        %v1485 = vand.u32 %v205, 4294901760
        %v1486 = vsub.f32 %v205, %v1485
        %1487 = vmatpush1.msra.mxu0 %v1486
        %v1488 = vand.u32 %v210, 4294901760
        %v1489 = vsub.f32 %v210, %v1488
        %1490 = vmatprep.subr.mxu0 %v1489
        %v1491 = vand.u32 %v209, 4294901760
        %v1492 = vsub.f32 %v209, %v1491
        %1493 = vmatpush1.msra.mxu0 %v1492
        %v1494 = vand.u32 %v214, 4294901760
        %v1495 = vsub.f32 %v214, %v1494
        %1496 = vmatprep.subr.mxu0 %v1495
        %v1497 = vand.u32 %v213, 4294901760
        %v1498 = vsub.f32 %v213, %v1497
        %1499 = vmatpush1.msra.mxu0 %v1498
        %v1500 = vand.u32 %v218, 4294901760
        %v1501 = vsub.f32 %v218, %v1500
        %1502 = vmatprep.subr.mxu0 %v1501
        %v1503 = vand.u32 %v217, 4294901760
        %v1504 = vsub.f32 %v217, %v1503
        %1505 = vmatpush1.msra.mxu0 %v1504
        %v1506 = vand.u32 %v222, 4294901760
        %v1507 = vsub.f32 %v222, %v1506
        %1508 = vmatprep.subr.mxu0 %v1507
        %v1509 = vand.u32 %v221, 4294901760
        %v1510 = vsub.f32 %v221, %v1509
        %1511 = vmatpush1.msra.mxu0 %v1510
        %v1512 = vand.u32 %v226, 4294901760
        %v1513 = vsub.f32 %v226, %v1512
        %1514 = vmatprep.subr.mxu0 %v1513
        %v1515 = vand.u32 %v225, 4294901760
        %v1516 = vsub.f32 %v225, %v1515
        %1517 = vmatpush1.msra.mxu0 %v1516
        %1518 = vmatprep.subr.mxu0 0.0
        %1519 = vmatpush1.msra.mxu0 0.0
        %1520 = vmatprep.subr.mxu0 0.0
        %1521 = vmatpush1.msra.mxu0 0.0
        %1522 = vmatprep.subr.mxu0 0.0
        %1523 = vmatpush1.msra.mxu0 0.0
        %1524 = vmatprep.subr.mxu0 0.0
        %1525 = vmatpush1.msra.mxu0 0.0
        %1526 = vmatprep.subr.mxu0 0.0
        %1527 = vmatpush1.msra.mxu0 0.0
        %1528 = vmatprep.subr.mxu0 0.0
        %1529 = vmatpush1.msra.mxu0 0.0
        %1530 = vmatprep.subr.mxu0 0.0
        %1531 = vmatpush1.msra.mxu0 0.0
        %1532 = vmatprep.subr.mxu0 0.0
        %1533 = vmatpush1.msra.mxu0 0.0
        %1534 = vmatprep.subr.mxu0 0.0
        %1535 = vmatpush1.msra.mxu0 0.0
        %1536 = vmatprep.subr.mxu0 0.0
        %1537 = vmatpush1.msra.mxu0 0.0
        %1538 = vmatprep.subr.mxu0 0.0
        %1539 = vmatpush1.msra.mxu0 0.0
        %1540 = vmatprep.subr.mxu0 0.0
        %1541 = vmatpush1.msra.mxu0 0.0
        %1542 = vmatprep.subr.mxu0 0.0
        %1543 = vmatpush1.msra.mxu0 0.0
        %1544 = vmatprep.subr.mxu0 0.0
        %1545 = vmatpush1.msra.mxu0 0.0
        %1546 = vmatprep.subr.mxu0 0.0
        %1547 = vmatpush1.msra.mxu0 0.0
        %1548 = vmatprep.subr.mxu0 0.0
        %1549 = vmatpush1.msra.mxu0 0.0
        %1550 = vmatprep.mubr.f32.mxu0 0.0
        %v1551 = vand.u32 %v162, 4294901760
        %v1552 = vsub.f32 %v162, %v1551
        %1553 = vmatmul.mubr.f32.gmra.mrb[0].mxu0 %v1552
        %v1554 = vpop.f32.mrb[0].mxu0
        %v1555 = vadd.f32 %v1418, %v1554
        %v1556 = vpop.f32.mrb[0].mxu0
        %v1557 = vadd.f32 %v1420, %v1556
        %1558 = vdwg.mxu0
        %v1559 = vand.u32 %v166, 4294901760
        %1560 = vmatprep.subr.mxu0 %v1559
        %v1561 = vand.u32 %v165, 4294901760
        %1562 = vmatpush1.msra.mxu0 %v1561
        %v1563 = vand.u32 %v170, 4294901760
        %1564 = vmatprep.subr.mxu0 %v1563
        %v1565 = vand.u32 %v169, 4294901760
        %1566 = vmatpush1.msra.mxu0 %v1565
        %v1567 = vand.u32 %v174, 4294901760
        %1568 = vmatprep.subr.mxu0 %v1567
        %v1569 = vand.u32 %v173, 4294901760
        %1570 = vmatpush1.msra.mxu0 %v1569
        %v1571 = vand.u32 %v178, 4294901760
        %1572 = vmatprep.subr.mxu0 %v1571
        %v1573 = vand.u32 %v177, 4294901760
        %1574 = vmatpush1.msra.mxu0 %v1573
        %v1575 = vand.u32 %v182, 4294901760
        %1576 = vmatprep.subr.mxu0 %v1575
        %v1577 = vand.u32 %v181, 4294901760
        %1578 = vmatpush1.msra.mxu0 %v1577
        %v1579 = vand.u32 %v186, 4294901760
        %1580 = vmatprep.subr.mxu0 %v1579
        %v1581 = vand.u32 %v185, 4294901760
        %1582 = vmatpush1.msra.mxu0 %v1581
        %v1583 = vand.u32 %v190, 4294901760
        %1584 = vmatprep.subr.mxu0 %v1583
        %v1585 = vand.u32 %v189, 4294901760
        %1586 = vmatpush1.msra.mxu0 %v1585
        %v1587 = vand.u32 %v194, 4294901760
        %1588 = vmatprep.subr.mxu0 %v1587
        %v1589 = vand.u32 %v193, 4294901760
        %1590 = vmatpush1.msra.mxu0 %v1589
        %v1591 = vand.u32 %v198, 4294901760
        %1592 = vmatprep.subr.mxu0 %v1591
        %v1593 = vand.u32 %v197, 4294901760
        %1594 = vmatpush1.msra.mxu0 %v1593
        %v1595 = vand.u32 %v202, 4294901760
        %1596 = vmatprep.subr.mxu0 %v1595
        %v1597 = vand.u32 %v201, 4294901760
        %1598 = vmatpush1.msra.mxu0 %v1597
        %v1599 = vand.u32 %v206, 4294901760
        %1600 = vmatprep.subr.mxu0 %v1599
        %v1601 = vand.u32 %v205, 4294901760
        %1602 = vmatpush1.msra.mxu0 %v1601
        %v1603 = vand.u32 %v210, 4294901760
        %1604 = vmatprep.subr.mxu0 %v1603
        %v1605 = vand.u32 %v209, 4294901760
        %1606 = vmatpush1.msra.mxu0 %v1605
        %v1607 = vand.u32 %v214, 4294901760
        %1608 = vmatprep.subr.mxu0 %v1607
        %v1609 = vand.u32 %v213, 4294901760
        %1610 = vmatpush1.msra.mxu0 %v1609
        %v1611 = vand.u32 %v218, 4294901760
        %1612 = vmatprep.subr.mxu0 %v1611
        %v1613 = vand.u32 %v217, 4294901760
        %1614 = vmatpush1.msra.mxu0 %v1613
        %v1615 = vand.u32 %v222, 4294901760
        %1616 = vmatprep.subr.mxu0 %v1615
        %v1617 = vand.u32 %v221, 4294901760
        %1618 = vmatpush1.msra.mxu0 %v1617
        %v1619 = vand.u32 %v226, 4294901760
        %1620 = vmatprep.subr.mxu0 %v1619
        %v1621 = vand.u32 %v225, 4294901760
        %1622 = vmatpush1.msra.mxu0 %v1621
        %1623 = vmatprep.subr.mxu0 0.0
        %1624 = vmatpush1.msra.mxu0 0.0
        %1625 = vmatprep.subr.mxu0 0.0
        %1626 = vmatpush1.msra.mxu0 0.0
        %1627 = vmatprep.subr.mxu0 0.0
        %1628 = vmatpush1.msra.mxu0 0.0
        %1629 = vmatprep.subr.mxu0 0.0
        %1630 = vmatpush1.msra.mxu0 0.0
        %1631 = vmatprep.subr.mxu0 0.0
        %1632 = vmatpush1.msra.mxu0 0.0
        %1633 = vmatprep.subr.mxu0 0.0
        %1634 = vmatpush1.msra.mxu0 0.0
        %1635 = vmatprep.subr.mxu0 0.0
        %1636 = vmatpush1.msra.mxu0 0.0
        %1637 = vmatprep.subr.mxu0 0.0
        %1638 = vmatpush1.msra.mxu0 0.0
        %1639 = vmatprep.subr.mxu0 0.0
        %1640 = vmatpush1.msra.mxu0 0.0
        %1641 = vmatprep.subr.mxu0 0.0
        %1642 = vmatpush1.msra.mxu0 0.0
        %1643 = vmatprep.subr.mxu0 0.0
        %1644 = vmatpush1.msra.mxu0 0.0
        %1645 = vmatprep.subr.mxu0 0.0
        %1646 = vmatpush1.msra.mxu0 0.0
        %1647 = vmatprep.subr.mxu0 0.0
        %1648 = vmatpush1.msra.mxu0 0.0
        %1649 = vmatprep.subr.mxu0 0.0
        %1650 = vmatpush1.msra.mxu0 0.0
        %1651 = vmatprep.subr.mxu0 0.0
        %1652 = vmatpush1.msra.mxu0 0.0
        %1653 = vmatprep.subr.mxu0 0.0
        %1654 = vmatpush1.msra.mxu0 0.0
        %1655 = vmatprep.mubr.f32.mxu0 0.0
        %v1656 = vand.u32 %v162, 4294901760
        %v1657 = vsub.f32 %v162, %v1656
        %v1658 = vand.u32 %v1657, 4294901760
        %1659 = vmatmul.mubr.f32.gmra.mrb[0].mxu0 %v1658
        %v1660 = vpop.f32.mrb[0].mxu0
        %v1661 = vadd.f32 %v1555, %v1660
        %v1662 = vpop.f32.mrb[0].mxu0
        %v1663 = vadd.f32 %v1557, %v1662
        %1664 = vdwg.mxu0
        %v1665 = vand.u32 %v166, 4294901760
        %v1666 = vsub.f32 %v166, %v1665
        %v1667 = vand.u32 %v1666, 4294901760
        %1668 = vmatprep.subr.mxu0 %v1667
        %v1669 = vand.u32 %v165, 4294901760
        %v1670 = vsub.f32 %v165, %v1669
        %v1671 = vand.u32 %v1670, 4294901760
        %1672 = vmatpush1.msra.mxu0 %v1671
        %v1673 = vand.u32 %v170, 4294901760
        %v1674 = vsub.f32 %v170, %v1673
        %v1675 = vand.u32 %v1674, 4294901760
        %1676 = vmatprep.subr.mxu0 %v1675
        %v1677 = vand.u32 %v169, 4294901760
        %v1678 = vsub.f32 %v169, %v1677
        %v1679 = vand.u32 %v1678, 4294901760
        %1680 = vmatpush1.msra.mxu0 %v1679
        %v1681 = vand.u32 %v174, 4294901760
        %v1682 = vsub.f32 %v174, %v1681
        %v1683 = vand.u32 %v1682, 4294901760
        %1684 = vmatprep.subr.mxu0 %v1683
        %v1685 = vand.u32 %v173, 4294901760
        %v1686 = vsub.f32 %v173, %v1685
        %v1687 = vand.u32 %v1686, 4294901760
        %1688 = vmatpush1.msra.mxu0 %v1687
        %v1689 = vand.u32 %v178, 4294901760
        %v1690 = vsub.f32 %v178, %v1689
        %v1691 = vand.u32 %v1690, 4294901760
        %1692 = vmatprep.subr.mxu0 %v1691
        %v1693 = vand.u32 %v177, 4294901760
        %v1694 = vsub.f32 %v177, %v1693
        %v1695 = vand.u32 %v1694, 4294901760
        %1696 = vmatpush1.msra.mxu0 %v1695
        %v1697 = vand.u32 %v182, 4294901760
        %v1698 = vsub.f32 %v182, %v1697
        %v1699 = vand.u32 %v1698, 4294901760
        %1700 = vmatprep.subr.mxu0 %v1699
        %v1701 = vand.u32 %v181, 4294901760
        %v1702 = vsub.f32 %v181, %v1701
        %v1703 = vand.u32 %v1702, 4294901760
        %1704 = vmatpush1.msra.mxu0 %v1703
        %v1705 = vand.u32 %v186, 4294901760
        %v1706 = vsub.f32 %v186, %v1705
        %v1707 = vand.u32 %v1706, 4294901760
        %1708 = vmatprep.subr.mxu0 %v1707
        %v1709 = vand.u32 %v185, 4294901760
        %v1710 = vsub.f32 %v185, %v1709
        %v1711 = vand.u32 %v1710, 4294901760
        %1712 = vmatpush1.msra.mxu0 %v1711
        %v1713 = vand.u32 %v190, 4294901760
        %v1714 = vsub.f32 %v190, %v1713
        %v1715 = vand.u32 %v1714, 4294901760
        %1716 = vmatprep.subr.mxu0 %v1715
        %v1717 = vand.u32 %v189, 4294901760
        %v1718 = vsub.f32 %v189, %v1717
        %v1719 = vand.u32 %v1718, 4294901760
        %1720 = vmatpush1.msra.mxu0 %v1719
        %v1721 = vand.u32 %v194, 4294901760
        %v1722 = vsub.f32 %v194, %v1721
        %v1723 = vand.u32 %v1722, 4294901760
        %1724 = vmatprep.subr.mxu0 %v1723
        %v1725 = vand.u32 %v193, 4294901760
        %v1726 = vsub.f32 %v193, %v1725
        %v1727 = vand.u32 %v1726, 4294901760
        %1728 = vmatpush1.msra.mxu0 %v1727
        %v1729 = vand.u32 %v198, 4294901760
        %v1730 = vsub.f32 %v198, %v1729
        %v1731 = vand.u32 %v1730, 4294901760
        %1732 = vmatprep.subr.mxu0 %v1731
        %v1733 = vand.u32 %v197, 4294901760
        %v1734 = vsub.f32 %v197, %v1733
        %v1735 = vand.u32 %v1734, 4294901760
        %1736 = vmatpush1.msra.mxu0 %v1735
        %v1737 = vand.u32 %v202, 4294901760
        %v1738 = vsub.f32 %v202, %v1737
        %v1739 = vand.u32 %v1738, 4294901760
        %1740 = vmatprep.subr.mxu0 %v1739
        %v1741 = vand.u32 %v201, 4294901760
        %v1742 = vsub.f32 %v201, %v1741
        %v1743 = vand.u32 %v1742, 4294901760
        %1744 = vmatpush1.msra.mxu0 %v1743
        %v1745 = vand.u32 %v206, 4294901760
        %v1746 = vsub.f32 %v206, %v1745
        %v1747 = vand.u32 %v1746, 4294901760
        %1748 = vmatprep.subr.mxu0 %v1747
        %v1749 = vand.u32 %v205, 4294901760
        %v1750 = vsub.f32 %v205, %v1749
        %v1751 = vand.u32 %v1750, 4294901760
        %1752 = vmatpush1.msra.mxu0 %v1751
        %v1753 = vand.u32 %v210, 4294901760
        %v1754 = vsub.f32 %v210, %v1753
        %v1755 = vand.u32 %v1754, 4294901760
        %1756 = vmatprep.subr.mxu0 %v1755
        %v1757 = vand.u32 %v209, 4294901760
        %v1758 = vsub.f32 %v209, %v1757
        %v1759 = vand.u32 %v1758, 4294901760
        %1760 = vmatpush1.msra.mxu0 %v1759
        %v1761 = vand.u32 %v214, 4294901760
        %v1762 = vsub.f32 %v214, %v1761
        %v1763 = vand.u32 %v1762, 4294901760
        %1764 = vmatprep.subr.mxu0 %v1763
        %v1765 = vand.u32 %v213, 4294901760
        %v1766 = vsub.f32 %v213, %v1765
        %v1767 = vand.u32 %v1766, 4294901760
        %1768 = vmatpush1.msra.mxu0 %v1767
        %v1769 = vand.u32 %v218, 4294901760
        %v1770 = vsub.f32 %v218, %v1769
        %v1771 = vand.u32 %v1770, 4294901760
        %1772 = vmatprep.subr.mxu0 %v1771
        %v1773 = vand.u32 %v217, 4294901760
        %v1774 = vsub.f32 %v217, %v1773
        %v1775 = vand.u32 %v1774, 4294901760
        %1776 = vmatpush1.msra.mxu0 %v1775
        %v1777 = vand.u32 %v222, 4294901760
        %v1778 = vsub.f32 %v222, %v1777
        %v1779 = vand.u32 %v1778, 4294901760
        %1780 = vmatprep.subr.mxu0 %v1779
        %v1781 = vand.u32 %v221, 4294901760
        %v1782 = vsub.f32 %v221, %v1781
        %v1783 = vand.u32 %v1782, 4294901760
        %1784 = vmatpush1.msra.mxu0 %v1783
        %v1785 = vand.u32 %v226, 4294901760
        %v1786 = vsub.f32 %v226, %v1785
        %v1787 = vand.u32 %v1786, 4294901760
        %1788 = vmatprep.subr.mxu0 %v1787
        %v1789 = vand.u32 %v225, 4294901760
        %v1790 = vsub.f32 %v225, %v1789
        %v1791 = vand.u32 %v1790, 4294901760
        %1792 = vmatpush1.msra.mxu0 %v1791
        %1793 = vmatprep.subr.mxu0 0.0
        %1794 = vmatpush1.msra.mxu0 0.0
        %1795 = vmatprep.subr.mxu0 0.0
        %1796 = vmatpush1.msra.mxu0 0.0
        %1797 = vmatprep.subr.mxu0 0.0
        %1798 = vmatpush1.msra.mxu0 0.0
        %1799 = vmatprep.subr.mxu0 0.0
        %1800 = vmatpush1.msra.mxu0 0.0
        %1801 = vmatprep.subr.mxu0 0.0
        %1802 = vmatpush1.msra.mxu0 0.0
        %1803 = vmatprep.subr.mxu0 0.0
        %1804 = vmatpush1.msra.mxu0 0.0
        %1805 = vmatprep.subr.mxu0 0.0
        %1806 = vmatpush1.msra.mxu0 0.0
        %1807 = vmatprep.subr.mxu0 0.0
        %1808 = vmatpush1.msra.mxu0 0.0
        %1809 = vmatprep.subr.mxu0 0.0
        %1810 = vmatpush1.msra.mxu0 0.0
        %1811 = vmatprep.subr.mxu0 0.0
        %1812 = vmatpush1.msra.mxu0 0.0
        %1813 = vmatprep.subr.mxu0 0.0
        %1814 = vmatpush1.msra.mxu0 0.0
        %1815 = vmatprep.subr.mxu0 0.0
        %1816 = vmatpush1.msra.mxu0 0.0
        %1817 = vmatprep.subr.mxu0 0.0
        %1818 = vmatpush1.msra.mxu0 0.0
        %1819 = vmatprep.subr.mxu0 0.0
        %1820 = vmatpush1.msra.mxu0 0.0
        %1821 = vmatprep.subr.mxu0 0.0
        %1822 = vmatpush1.msra.mxu0 0.0
        %1823 = vmatprep.subr.mxu0 0.0
        %1824 = vmatpush1.msra.mxu0 0.0
        %1825 = vmatprep.mubr.f32.mxu0 0.0
        %v1826 = vand.u32 %v162, 4294901760
        %1827 = vmatmul.mubr.f32.gmra.mrb[0].mxu0 %v1826
        %v1828 = vpop.f32.mrb[0].mxu0
        %v1829 = vadd.f32 %v1661, %v1828
        %v1830 = vpop.f32.mrb[0].mxu0
        %v1831 = vadd.f32 %v1663, %v1830
        %1832 = vdwg.mxu0
        %v1833 = vand.u32 %v166, 4294901760
        %1834 = vmatprep.subr.mxu0 %v1833
        %v1835 = vand.u32 %v165, 4294901760
        %1836 = vmatpush1.msra.mxu0 %v1835
        %v1837 = vand.u32 %v170, 4294901760
        %1838 = vmatprep.subr.mxu0 %v1837
        %v1839 = vand.u32 %v169, 4294901760
        %1840 = vmatpush1.msra.mxu0 %v1839
        %v1841 = vand.u32 %v174, 4294901760
        %1842 = vmatprep.subr.mxu0 %v1841
        %v1843 = vand.u32 %v173, 4294901760
        %1844 = vmatpush1.msra.mxu0 %v1843
        %v1845 = vand.u32 %v178, 4294901760
        %1846 = vmatprep.subr.mxu0 %v1845
        %v1847 = vand.u32 %v177, 4294901760
        %1848 = vmatpush1.msra.mxu0 %v1847
        %v1849 = vand.u32 %v182, 4294901760
        %1850 = vmatprep.subr.mxu0 %v1849
        %v1851 = vand.u32 %v181, 4294901760
        %1852 = vmatpush1.msra.mxu0 %v1851
        %v1853 = vand.u32 %v186, 4294901760
        %1854 = vmatprep.subr.mxu0 %v1853
        %v1855 = vand.u32 %v185, 4294901760
        %1856 = vmatpush1.msra.mxu0 %v1855
        %v1857 = vand.u32 %v190, 4294901760
        %1858 = vmatprep.subr.mxu0 %v1857
        %v1859 = vand.u32 %v189, 4294901760
        %1860 = vmatpush1.msra.mxu0 %v1859
        %v1861 = vand.u32 %v194, 4294901760
        %1862 = vmatprep.subr.mxu0 %v1861
        %v1863 = vand.u32 %v193, 4294901760
        %1864 = vmatpush1.msra.mxu0 %v1863
        %v1865 = vand.u32 %v198, 4294901760
        %1866 = vmatprep.subr.mxu0 %v1865
        %v1867 = vand.u32 %v197, 4294901760
        %1868 = vmatpush1.msra.mxu0 %v1867
        %v1869 = vand.u32 %v202, 4294901760
        %1870 = vmatprep.subr.mxu0 %v1869
        %v1871 = vand.u32 %v201, 4294901760
        %1872 = vmatpush1.msra.mxu0 %v1871
        %v1873 = vand.u32 %v206, 4294901760
        %1874 = vmatprep.subr.mxu0 %v1873
        %v1875 = vand.u32 %v205, 4294901760
        %1876 = vmatpush1.msra.mxu0 %v1875
        %v1877 = vand.u32 %v210, 4294901760
        %1878 = vmatprep.subr.mxu0 %v1877
        %v1879 = vand.u32 %v209, 4294901760
        %1880 = vmatpush1.msra.mxu0 %v1879
        %v1881 = vand.u32 %v214, 4294901760
        %1882 = vmatprep.subr.mxu0 %v1881
        %v1883 = vand.u32 %v213, 4294901760
        %1884 = vmatpush1.msra.mxu0 %v1883
        %v1885 = vand.u32 %v218, 4294901760
        %1886 = vmatprep.subr.mxu0 %v1885
        %v1887 = vand.u32 %v217, 4294901760
        %1888 = vmatpush1.msra.mxu0 %v1887
        %v1889 = vand.u32 %v222, 4294901760
        %1890 = vmatprep.subr.mxu0 %v1889
        %v1891 = vand.u32 %v221, 4294901760
        %1892 = vmatpush1.msra.mxu0 %v1891
        %v1893 = vand.u32 %v226, 4294901760
        %1894 = vmatprep.subr.mxu0 %v1893
        %v1895 = vand.u32 %v225, 4294901760
        %1896 = vmatpush1.msra.mxu0 %v1895
        %1897 = vmatprep.subr.mxu0 0.0
        %1898 = vmatpush1.msra.mxu0 0.0
        %1899 = vmatprep.subr.mxu0 0.0
        %1900 = vmatpush1.msra.mxu0 0.0
        %1901 = vmatprep.subr.mxu0 0.0
        %1902 = vmatpush1.msra.mxu0 0.0
        %1903 = vmatprep.subr.mxu0 0.0
        %1904 = vmatpush1.msra.mxu0 0.0
        %1905 = vmatprep.subr.mxu0 0.0
        %1906 = vmatpush1.msra.mxu0 0.0
        %1907 = vmatprep.subr.mxu0 0.0
        %1908 = vmatpush1.msra.mxu0 0.0
        %1909 = vmatprep.subr.mxu0 0.0
        %1910 = vmatpush1.msra.mxu0 0.0
        %1911 = vmatprep.subr.mxu0 0.0
        %1912 = vmatpush1.msra.mxu0 0.0
        %1913 = vmatprep.subr.mxu0 0.0
        %1914 = vmatpush1.msra.mxu0 0.0
        %1915 = vmatprep.subr.mxu0 0.0
        %1916 = vmatpush1.msra.mxu0 0.0
        %1917 = vmatprep.subr.mxu0 0.0
        %1918 = vmatpush1.msra.mxu0 0.0
        %1919 = vmatprep.subr.mxu0 0.0
        %1920 = vmatpush1.msra.mxu0 0.0
        %1921 = vmatprep.subr.mxu0 0.0
        %1922 = vmatpush1.msra.mxu0 0.0
        %1923 = vmatprep.subr.mxu0 0.0
        %1924 = vmatpush1.msra.mxu0 0.0
        %1925 = vmatprep.subr.mxu0 0.0
        %1926 = vmatpush1.msra.mxu0 0.0
        %1927 = vmatprep.subr.mxu0 0.0
        %1928 = vmatpush1.msra.mxu0 0.0
        %1929 = vmatprep.mubr.f32.mxu0 0.0
        %v1930 = vand.u32 %v162, 4294901760
        %1931 = vmatmul.mubr.f32.gmra.mrb[0].mxu0 %v1930
        %v1932 = vpop.f32.mrb[0].mxu0
        %v1933 = vadd.f32 %v1829, %v1932
        %v1934 = vpop.f32.mrb[0].mxu0
        %v1935 = vadd.f32 %v1831, %v1934
        %1936 = vdwg.mxu0
        %v1937 = vmul.f32 %v1078, 22.627417
        %v1938 = vmul.f32 %v1080, 22.627417
        %v1939 = vmul.f32 %v1933, 22.627417
        %v1940 = vmul.f32 %v1935, 22.627417
        %1941 = vst [vmem:[%s149] sm:$0xff] %v1937
        %1942 = vst [vmem:[%s149 + $0x8] sm:$0xff] %v1938
        %1943 = vst [vmem:[%s149 + $0x10] sm:$0xff] %v1939
        %1944 = vst [vmem:[%s149 + $0x18] sm:$0xff] %v1940
        %s1945 = sand.u32 %s72, 1
        %s1946 = scalar_lea.sflag [#allocation4], %s1945
        %s1947 = sand.u32 %s72, 1
        %s1948 = smul.addr %s1947, 32
        %s1949 = scalar_lea.vmem [#allocation5], %s1948
        // Predicated region
        $region33: #{tpu_custom_call.1} parent=27 // pred_check
          %p1950 = pneg %p82
        $region34: #{tpu_custom_call.1} parent=27 // pred_check_branch
          %1952 = sbr.rel (%p1950) target = $region36
        $region35: #{tpu_custom_call.1} parent=27 // pred_region
          %s1954 = ssub.s32 512, 512
          %1955 = vsyncadd %s1946, %s1954
          %s1956 = smul.addr %s17, 4
          %s1957 = smul.addr %s1956, 128
          %s1958 = scalar_lea.hbm %s2, %s1957
          %s1960 = sshll.u32 %s1949, 4
          %s1961 = int_to_ptr.vmem [resolvable:$true] %s1960
          %1963 = dma.vmem_to_hbm [thread:$0]  %s1961, 512, %s1958, %s1946
        $region36: #{tpu_custom_call.1} parent=27 // pred_fallthru
          _
      $region28: #{tpu_custom_call.1} parent=5 // pred_fallthru
        _
      %p1964 = scmp.le.s32.totalorder 2, %s12
      // Predicated region
      $region37: #{tpu_custom_call.1} parent=5 // pred_check
        %p1965 = pneg %p1964
      $region38: #{tpu_custom_call.1} parent=5 // pred_check_branch
        %1967 = sbr.rel (%p1965) target = $region40
      $region39: #{tpu_custom_call.1} parent=5 // pred_region
        %s1968 = ssub.s32 %s12, 2
        // Predicated region
        $region41: #{tpu_custom_call.1} parent=39 // pred_check
          %p1969 = pneg %p88
        $region42: #{tpu_custom_call.1} parent=39 // pred_check_branch
          %1971 = sbr.rel (%p1969) target = $region44
        $region43: #{tpu_custom_call.1} parent=39 // pred_region
          %s1972 = sand.u32 %s73, 1
          %s1973 = scalar_lea.sflag [#allocation4], %s1972
          %s1974 = sand.u32 %s73, 1
          %s1975 = smul.addr %s1974, 32
          %s1976 = scalar_lea.vmem [#allocation5], %s1975
          %1977 = dma.done %s1973, 512
        $region44: #{tpu_custom_call.1} parent=39 // pred_fallthru
          _
      $region40: #{tpu_custom_call.1} parent=5 // pred_fallthru
        _
    $region6: #{tpu_custom_call.1} parent=1 // loop_footer
      %s16 = sadd.s32 1, %s12
    $region7: #{tpu_custom_call.1} parent=1 // loop_footer_branch
      %11 = sbr.rel target = $region3
    $region8: #{tpu_custom_call.1} parent=1 // loop_exit
      _
    %1978 = vsyncpa [#allocation3], 1
    %s1979 = scalar_lea.sflag [#allocation3], 1
    %1980 = vsyncpa %s1979, 1
    %1981 = vsyncpa [#allocation4], 1
    %s1982 = scalar_lea.sflag [#allocation4], 1
    %1983 = vsyncpa %s1982, 1

</llo_original>
